<compile_context>
chip_gen: v7x
topology: tpu7x:2x2x1
jax: 0.10.0
libtpu: 0.0.40
codegen_flags: <defaults>
</compile_context>

<pallas_src>
import jax
import jax.numpy as jnp
from jax.experimental import pallas as pl
from jax.experimental.pallas import tpu as pltpu

EPS = 1e-5  # nn.BatchNorm2d default eps


# ---------------------------------------------------------------------------
# Fused Pallas kernel: Conv (as 4 quadrant GEMMs) + BN(train) + ReLU + MaxPool
# ---------------------------------------------------------------------------
def conv_bn_relu_pool_kernel(wq_ref, gamma_ref, beta_ref, s_ref, out_ref):
    # wq_ref:    (4, Cout, RRC) per-quadrant zero-padded weights on the (r,s,ci) grid
    # gamma/beta:(Cout, 1)      BatchNorm affine parameters
    # s_ref:     (RRC, Pp)      offset slabs, Pp = N*Hp*Wp on the lane axis
    # out_ref:   (Cout, Pp)     pooled stage output (lane-dense)
    s = s_ref[...]

    # One GEMM per 2x2-pool quadrant -> the 4 interleaved conv-output images.
    acc = [jnp.dot(wq_ref[q], s, preferred_element_type=jnp.float32)
           for q in range(4)]                                    # 4 x (Cout, Pp)

    # BatchNorm2d training-mode stats: per-channel over all N*Ho*Wo conv
    # positions, which is exactly the union of the 4 quadrants.
    n_pos = 4.0 * s.shape[1]
    total = acc[0] + acc[1] + acc[2] + acc[3]
    mean = jnp.sum(total, axis=1, keepdims=True) / n_pos         # (Cout, 1)
    cq = [a - mean for a in acc]
    var = (jnp.sum(cq[0] * cq[0], axis=1, keepdims=True)
           + jnp.sum(cq[1] * cq[1], axis=1, keepdims=True)
           + jnp.sum(cq[2] * cq[2], axis=1, keepdims=True)
           + jnp.sum(cq[3] * cq[3], axis=1, keepdims=True)) / n_pos
    scale = gamma_ref[...] * jax.lax.rsqrt(var + EPS)            # (Cout, 1)
    beta = beta_ref[...]

    # BN affine + ReLU per quadrant; MaxPool2d(2,2) == elementwise max of the
    # 4 quadrant images.
    y = [jnp.maximum(c * scale + beta, 0.0) for c in cq]
    out_ref[...] = jnp.maximum(jnp.maximum(y[0], y[1]), jnp.maximum(y[2], y[3]))


# ---------------------------------------------------------------------------
# Glue + wrapper
# ---------------------------------------------------------------------------
def _quadrant_weights(w):
    # w: (Cout, Cin, K, K) -> (4, Cout, (K+1)*(K+1)*Cin) so that quadrant
    # (dh, dw) reads tap (ki, kj) at offset grid position (r, s) = (dh+ki, dw+kj).
    Cout, Cin, K, _ = w.shape
    R = K + 1
    w_t = jnp.transpose(w, (0, 2, 3, 1))                 # (Cout, K, K, Cin)
    wq = jnp.zeros((2, 2, Cout, R, R, Cin), w.dtype)
    for dh in range(2):
        for dw in range(2):
            wq = wq.at[dh, dw, :, dh:dh + K, dw:dw + K, :].set(w_t)
    return wq.reshape(4, Cout, R * R * Cin)


def conv_stage(x_cm, w, gamma, beta):
    # x_cm: (Cin, N, H, W) channel-major.  Returns (Cout, N, Hp, Wp) channel-major.
    # Assumes the conv output spatial dims (H-K+1, W-K+1) are even (true here).
    Cout, Cin, K, _ = w.shape
    _, N, H, W = x_cm.shape
    Hp, Wp = (H - K + 1) // 2, (W - K + 1) // 2
    Pp = N * Hp * Wp
    R = K + 1
    RRC = R * R * Cin

    # Offset slabs: S[(r, s, ci), (n, hp, wp)] = x[ci, n, 2*hp + r, 2*wp + s].
    slabs = [x_cm[:, :, r:r + 2 * Hp:2, s:s + 2 * Wp:2]          # (Cin, N, Hp, Wp)
             for r in range(R) for s in range(R)]
    S = jnp.stack(slabs, axis=0).reshape(RRC, Pp)                # (RRC, Pp)

    wq = _quadrant_weights(w)                                    # (4, Cout, RRC)

    out = pl.pallas_call(
        conv_bn_relu_pool_kernel,
        out_shape=jax.ShapeDtypeStruct((Cout, Pp), jnp.float32),
        grid=(1,),
        in_specs=[
            pl.BlockSpec((4, Cout, RRC), lambda i: (0, 0, 0)),
            pl.BlockSpec((Cout, 1), lambda i: (0, 0)),
            pl.BlockSpec((Cout, 1), lambda i: (0, 0)),
            pl.BlockSpec((RRC, Pp), lambda i: (0, 0)),
        ],
        out_specs=pl.BlockSpec((Cout, Pp), lambda i: (0, 0)),
        compiler_params=pltpu.CompilerParams(dimension_semantics=("arbitrary",)),
    )(wq, gamma.reshape(Cout, 1), beta.reshape(Cout, 1), S)
    return out.reshape(Cout, N, Hp, Wp)


def forward(x_nchw, params, module_out=True):
    # Conv bias is intentionally not used: it cancels exactly under train-mode BN.
    w1, _b1, g1, be1 = params["conv1"]
    w2, _b2, g2, be2 = params["conv2"]
    x_cm = jnp.transpose(x_nchw, (1, 0, 2, 3))       # (Cin, N, H, W), boundary only
    y1 = conv_stage(x_cm, w1, g1, be1)               # (6, N, 12, 12)
    y2 = conv_stage(y1, w2, g2, be2)                 # (16, N, 4, 4)
    out2 = jnp.transpose(y2, (1, 0, 2, 3))           # NCHW at module boundary
    if module_out:
        out1 = jnp.transpose(y1, (1, 0, 2, 3))
        return [out1, out2]
    return out2


# ---------------------------------------------------------------------------
# Deterministic params (PyTorch shapes; BN gamma=1, beta=0 defaults)
# ---------------------------------------------------------------------------
def init_params(key):
    k1, k2, k3, k4 = jax.random.split(key, 4)
    w1 = 0.1 * jax.random.normal(k1, (6, 1, 5, 5), jnp.float32)
    b1 = 0.1 * jax.random.normal(k2, (6,), jnp.float32)
    w2 = 0.1 * jax.random.normal(k3, (16, 6, 5, 5), jnp.float32)
    b2 = 0.1 * jax.random.normal(k4, (16,), jnp.float32)
    return {
        "conv1": (w1, b1, jnp.ones((6,), jnp.float32), jnp.zeros((6,), jnp.float32)),
        "conv2": (w2, b2, jnp.ones((16,), jnp.float32), jnp.zeros((16,), jnp.float32)),
    }


# Pure-JAX reference (includes the conv bias, proving the in-kernel drop is exact).
def ref_stage(x, w, b, gamma, beta):
    y = jax.lax.conv_general_dilated(
        x, w, (1, 1), "VALID", dimension_numbers=("NCHW", "OIHW", "NCHW"))
    y = y + b[None, :, None, None]
    mean = y.mean(axis=(0, 2, 3), keepdims=True)
    var = ((y - mean) ** 2).mean(axis=(0, 2, 3), keepdims=True)
    y = (y - mean) * jax.lax.rsqrt(var + EPS)
    y = y * gamma[None, :, None, None] + beta[None, :, None, None]
    y = jnp.maximum(y, 0.0)
    N, C, H, W = y.shape
    return y.reshape(N, C, H // 2, 2, W // 2, 2).max(axis=(3, 5))


if __name__ == "__main__":
    key = jax.random.PRNGKey(0)
    kx, kp = jax.random.split(key)
    x = jax.random.normal(kx, (2, 1, 28, 28), jnp.float32)  # NCHW, MNIST-like
    params = init_params(kp)

    out1, out2 = jax.jit(lambda xx: forward(xx, params, module_out=True))(x)
    jax.block_until_ready(out1)
    jax.block_until_ready(out2)

    assert out1.shape == (2, 6, 12, 12), out1.shape
    assert out2.shape == (2, 16, 4, 4), out2.shape

    r1 = ref_stage(x, *params["conv1"])
    r2 = ref_stage(r1, *params["conv2"])
    assert jnp.allclose(out1, r1, atol=1e-3, rtol=1e-3)
    assert jnp.allclose(out2, r2, atol=1e-3, rtol=1e-3)

    print("KERNEL_OK")
</pallas_src>

<mosaic_0001>
module attributes {stable_mosaic.version = 11 : i64} {
  func.func @conv_bn_relu_pool_kernel(%arg0: i32, %arg1: memref<4x6x36xf32, #tpu.memory_space<vmem>>, %arg2: memref<6x1xf32, #tpu.memory_space<vmem>>, %arg3: memref<6x1xf32, #tpu.memory_space<vmem>>, %arg4: memref<36x288xf32, #tpu.memory_space<vmem>>, %arg5: memref<6x288xf32, #tpu.memory_space<vmem>>) attributes {dimension_semantics = [#tpu.dimension_semantics<arbitrary>], iteration_bounds = array<i64: 1>, scalar_prefetch = 0 : i64, scratch_operands = 0 : i64, tpu.core_type = #tpu.core_type<tc>, window_params = [{pipeline_mode = #tpu.pipeline_mode<synchronous>, transform_indices = @transform_0, window_bounds = array<i64: 4, 6, 36>}, {pipeline_mode = #tpu.pipeline_mode<synchronous>, transform_indices = @transform_1, window_bounds = array<i64: 6, 1>}, {pipeline_mode = #tpu.pipeline_mode<synchronous>, transform_indices = @transform_2, window_bounds = array<i64: 6, 1>}, {pipeline_mode = #tpu.pipeline_mode<synchronous>, transform_indices = @transform_3, window_bounds = array<i64: 36, 288>}, {pipeline_mode = #tpu.pipeline_mode<synchronous>, transform_indices = @transform_4, window_bounds = array<i64: 6, 288>}]} {
    %c0 = arith.constant 0 : index
    %c0_0 = arith.constant 0 : index
    %0 = vector.load %arg4[%c0, %c0_0] : memref<36x288xf32, #tpu.memory_space<vmem>>, vector<36x288xf32>
    %c0_1 = arith.constant 0 : index
    %c0_2 = arith.constant 0 : index
    %c0_3 = arith.constant 0 : index
    %1 = vector.load %arg1[%c0_1, %c0_2, %c0_3] : memref<4x6x36xf32, #tpu.memory_space<vmem>>, vector<1x6x36xf32>
    %2 = vector.shape_cast %1 : vector<1x6x36xf32> to vector<6x36xf32>
    %cst = arith.constant dense<0.000000e+00> : vector<6x288xf32>
    %3 = tpu.matmul %2, %0, %cst {dimension_numbers = #tpu.dot_dimension_numbers<[1], [0], [0], [1], [0, 0, 1, 1], [], []>} : vector<6x36xf32>, vector<36x288xf32>, vector<6x288xf32> -> vector<6x288xf32>
    %c1 = arith.constant 1 : index
    %c0_4 = arith.constant 0 : index
    %c0_5 = arith.constant 0 : index
    %4 = vector.load %arg1[%c1, %c0_4, %c0_5] : memref<4x6x36xf32, #tpu.memory_space<vmem>>, vector<1x6x36xf32>
    %5 = vector.shape_cast %4 : vector<1x6x36xf32> to vector<6x36xf32>
    %cst_6 = arith.constant dense<0.000000e+00> : vector<6x288xf32>
    %6 = tpu.matmul %5, %0, %cst_6 {dimension_numbers = #tpu.dot_dimension_numbers<[1], [0], [0], [1], [0, 0, 1, 1], [], []>} : vector<6x36xf32>, vector<36x288xf32>, vector<6x288xf32> -> vector<6x288xf32>
    %c2 = arith.constant 2 : index
    %c0_7 = arith.constant 0 : index
    %c0_8 = arith.constant 0 : index
    %7 = vector.load %arg1[%c2, %c0_7, %c0_8] : memref<4x6x36xf32, #tpu.memory_space<vmem>>, vector<1x6x36xf32>
    %8 = vector.shape_cast %7 : vector<1x6x36xf32> to vector<6x36xf32>
    %cst_9 = arith.constant dense<0.000000e+00> : vector<6x288xf32>
    %9 = tpu.matmul %8, %0, %cst_9 {dimension_numbers = #tpu.dot_dimension_numbers<[1], [0], [0], [1], [0, 0, 1, 1], [], []>} : vector<6x36xf32>, vector<36x288xf32>, vector<6x288xf32> -> vector<6x288xf32>
    %c3 = arith.constant 3 : index
    %c0_10 = arith.constant 0 : index
    %c0_11 = arith.constant 0 : index
    %10 = vector.load %arg1[%c3, %c0_10, %c0_11] : memref<4x6x36xf32, #tpu.memory_space<vmem>>, vector<1x6x36xf32>
    %11 = vector.shape_cast %10 : vector<1x6x36xf32> to vector<6x36xf32>
    %cst_12 = arith.constant dense<0.000000e+00> : vector<6x288xf32>
    %12 = tpu.matmul %11, %0, %cst_12 {dimension_numbers = #tpu.dot_dimension_numbers<[1], [0], [0], [1], [0, 0, 1, 1], [], []>} : vector<6x36xf32>, vector<36x288xf32>, vector<6x288xf32> -> vector<6x288xf32>
    %13 = arith.addf %3, %6 : vector<6x288xf32>
    %14 = arith.addf %13, %9 : vector<6x288xf32>
    %15 = arith.addf %14, %12 : vector<6x288xf32>
    %cst_13 = arith.constant dense<0.000000e+00> : vector<6xf32>
    %16 = vector.multi_reduction <add>, %15, %cst_13 [1] : vector<6x288xf32> to vector<6xf32>
    %17 = vector.shape_cast %16 : vector<6xf32> to vector<6x1xf32>
    %cst_14 = arith.constant 1.152000e+03 : f32
    %18 = vector.broadcast %cst_14 : f32 to vector<6x1xf32>
    %19 = arith.divf %17, %18 : vector<6x1xf32>
    %20 = vector.broadcast %19 : vector<6x1xf32> to vector<6x288xf32>
    %21 = arith.subf %3, %20 : vector<6x288xf32>
    %22 = vector.broadcast %19 : vector<6x1xf32> to vector<6x288xf32>
    %23 = arith.subf %6, %22 : vector<6x288xf32>
    %24 = vector.broadcast %19 : vector<6x1xf32> to vector<6x288xf32>
    %25 = arith.subf %9, %24 : vector<6x288xf32>
    %26 = vector.broadcast %19 : vector<6x1xf32> to vector<6x288xf32>
    %27 = arith.subf %12, %26 : vector<6x288xf32>
    %28 = arith.mulf %21, %21 : vector<6x288xf32>
    %cst_15 = arith.constant dense<0.000000e+00> : vector<6xf32>
    %29 = vector.multi_reduction <add>, %28, %cst_15 [1] : vector<6x288xf32> to vector<6xf32>
    %30 = vector.shape_cast %29 : vector<6xf32> to vector<6x1xf32>
    %31 = arith.mulf %23, %23 : vector<6x288xf32>
    %cst_16 = arith.constant dense<0.000000e+00> : vector<6xf32>
    %32 = vector.multi_reduction <add>, %31, %cst_16 [1] : vector<6x288xf32> to vector<6xf32>
    %33 = vector.shape_cast %32 : vector<6xf32> to vector<6x1xf32>
    %34 = arith.addf %30, %33 : vector<6x1xf32>
    %35 = arith.mulf %25, %25 : vector<6x288xf32>
    %cst_17 = arith.constant dense<0.000000e+00> : vector<6xf32>
    %36 = vector.multi_reduction <add>, %35, %cst_17 [1] : vector<6x288xf32> to vector<6xf32>
    %37 = vector.shape_cast %36 : vector<6xf32> to vector<6x1xf32>
    %38 = arith.addf %34, %37 : vector<6x1xf32>
    %39 = arith.mulf %27, %27 : vector<6x288xf32>
    %cst_18 = arith.constant dense<0.000000e+00> : vector<6xf32>
    %40 = vector.multi_reduction <add>, %39, %cst_18 [1] : vector<6x288xf32> to vector<6xf32>
    %41 = vector.shape_cast %40 : vector<6xf32> to vector<6x1xf32>
    %42 = arith.addf %38, %41 : vector<6x1xf32>
    %cst_19 = arith.constant 1.152000e+03 : f32
    %43 = vector.broadcast %cst_19 : f32 to vector<6x1xf32>
    %44 = arith.divf %42, %43 : vector<6x1xf32>
    %c0_20 = arith.constant 0 : index
    %c0_21 = arith.constant 0 : index
    %45 = vector.load %arg2[%c0_20, %c0_21] : memref<6x1xf32, #tpu.memory_space<vmem>>, vector<6x1xf32>
    %cst_22 = arith.constant 9.99999974E-6 : f32
    %46 = vector.broadcast %cst_22 : f32 to vector<6x1xf32>
    %47 = arith.addf %44, %46 : vector<6x1xf32>
    %48 = math.rsqrt %47 : vector<6x1xf32>
    %49 = arith.mulf %45, %48 : vector<6x1xf32>
    %c0_23 = arith.constant 0 : index
    %c0_24 = arith.constant 0 : index
    %50 = vector.load %arg3[%c0_23, %c0_24] : memref<6x1xf32, #tpu.memory_space<vmem>>, vector<6x1xf32>
    %51 = vector.broadcast %49 : vector<6x1xf32> to vector<6x288xf32>
    %52 = arith.mulf %21, %51 : vector<6x288xf32>
    %53 = vector.broadcast %50 : vector<6x1xf32> to vector<6x288xf32>
    %54 = arith.addf %52, %53 : vector<6x288xf32>
    %cst_25 = arith.constant 0.000000e+00 : f32
    %55 = vector.broadcast %cst_25 : f32 to vector<6x288xf32>
    %56 = arith.maximumf %54, %55 : vector<6x288xf32>
    %57 = vector.broadcast %49 : vector<6x1xf32> to vector<6x288xf32>
    %58 = arith.mulf %23, %57 : vector<6x288xf32>
    %59 = vector.broadcast %50 : vector<6x1xf32> to vector<6x288xf32>
    %60 = arith.addf %58, %59 : vector<6x288xf32>
    %cst_26 = arith.constant 0.000000e+00 : f32
    %61 = vector.broadcast %cst_26 : f32 to vector<6x288xf32>
    %62 = arith.maximumf %60, %61 : vector<6x288xf32>
    %63 = vector.broadcast %49 : vector<6x1xf32> to vector<6x288xf32>
    %64 = arith.mulf %25, %63 : vector<6x288xf32>
    %65 = vector.broadcast %50 : vector<6x1xf32> to vector<6x288xf32>
    %66 = arith.addf %64, %65 : vector<6x288xf32>
    %cst_27 = arith.constant 0.000000e+00 : f32
    %67 = vector.broadcast %cst_27 : f32 to vector<6x288xf32>
    %68 = arith.maximumf %66, %67 : vector<6x288xf32>
    %69 = vector.broadcast %49 : vector<6x1xf32> to vector<6x288xf32>
    %70 = arith.mulf %27, %69 : vector<6x288xf32>
    %71 = vector.broadcast %50 : vector<6x1xf32> to vector<6x288xf32>
    %72 = arith.addf %70, %71 : vector<6x288xf32>
    %cst_28 = arith.constant 0.000000e+00 : f32
    %73 = vector.broadcast %cst_28 : f32 to vector<6x288xf32>
    %74 = arith.maximumf %72, %73 : vector<6x288xf32>
    %75 = arith.maximumf %56, %62 : vector<6x288xf32>
    %76 = arith.maximumf %68, %74 : vector<6x288xf32>
    %77 = arith.maximumf %75, %76 : vector<6x288xf32>
    %c0_29 = arith.constant 0 : index
    %c0_30 = arith.constant 0 : index
    %78 = vector.load %arg5[%c0_29, %c0_30] : memref<6x288xf32, #tpu.memory_space<vmem>>, vector<6x288xf32>
    tpu.vector_store %arg5[%c0_29, %c0_30], %77 {strides = array<i32>} : memref<6x288xf32, #tpu.memory_space<vmem>>, vector<6x288xf32>,
    return
  }
  func.func @transform_0(%arg0: i32) -> (i32, i32, i32) {
    %c0_i32 = arith.constant 0 : i32
    %c0_i32_0 = arith.constant 0 : i32
    %c0_i32_1 = arith.constant 0 : i32
    %c0_i32_2 = arith.constant 0 : i32
    return %c0_i32, %c0_i32_0, %c0_i32_1 : i32, i32, i32
  }
  func.func @transform_1(%arg0: i32) -> (i32, i32) {
    %c0_i32 = arith.constant 0 : i32
    %c0_i32_0 = arith.constant 0 : i32
    %c0_i32_1 = arith.constant 0 : i32
    return %c0_i32, %c0_i32_0 : i32, i32
  }
  func.func @transform_2(%arg0: i32) -> (i32, i32) {
    %c0_i32 = arith.constant 0 : i32
    %c0_i32_0 = arith.constant 0 : i32
    %c0_i32_1 = arith.constant 0 : i32
    return %c0_i32, %c0_i32_0 : i32, i32
  }
  func.func @transform_3(%arg0: i32) -> (i32, i32) {
    %c0_i32 = arith.constant 0 : i32
    %c0_i32_0 = arith.constant 0 : i32
    %c0_i32_1 = arith.constant 0 : i32
    return %c0_i32, %c0_i32_0 : i32, i32
  }
  func.func @transform_4(%arg0: i32) -> (i32, i32) {
    %c0_i32 = arith.constant 0 : i32
    %c0_i32_0 = arith.constant 0 : i32
    %c0_i32_1 = arith.constant 0 : i32
    return %c0_i32, %c0_i32_0 : i32, i32
  }
}

module attributes {stable_mosaic.version = 11 : i64} {
  func.func @conv_bn_relu_pool_kernel(%arg0: i32, %arg1: memref<4x16x216xf32, #tpu.memory_space<vmem>>, %arg2: memref<16x1xf32, #tpu.memory_space<vmem>>, %arg3: memref<16x1xf32, #tpu.memory_space<vmem>>, %arg4: memref<216x32xf32, #tpu.memory_space<vmem>>, %arg5: memref<16x32xf32, #tpu.memory_space<vmem>>) attributes {dimension_semantics = [#tpu.dimension_semantics<arbitrary>], iteration_bounds = array<i64: 1>, scalar_prefetch = 0 : i64, scratch_operands = 0 : i64, tpu.core_type = #tpu.core_type<tc>, window_params = [{pipeline_mode = #tpu.pipeline_mode<synchronous>, transform_indices = @transform_0, window_bounds = array<i64: 4, 16, 216>}, {pipeline_mode = #tpu.pipeline_mode<synchronous>, transform_indices = @transform_1, window_bounds = array<i64: 16, 1>}, {pipeline_mode = #tpu.pipeline_mode<synchronous>, transform_indices = @transform_2, window_bounds = array<i64: 16, 1>}, {pipeline_mode = #tpu.pipeline_mode<synchronous>, transform_indices = @transform_3, window_bounds = array<i64: 216, 32>}, {pipeline_mode = #tpu.pipeline_mode<synchronous>, transform_indices = @transform_4, window_bounds = array<i64: 16, 32>}]} {
    %c0 = arith.constant 0 : index
    %c0_0 = arith.constant 0 : index
    %0 = vector.load %arg4[%c0, %c0_0] : memref<216x32xf32, #tpu.memory_space<vmem>>, vector<216x32xf32>
    %c0_1 = arith.constant 0 : index
    %c0_2 = arith.constant 0 : index
    %c0_3 = arith.constant 0 : index
    %1 = vector.load %arg1[%c0_1, %c0_2, %c0_3] : memref<4x16x216xf32, #tpu.memory_space<vmem>>, vector<1x16x216xf32>
    %2 = vector.shape_cast %1 : vector<1x16x216xf32> to vector<16x216xf32>
    %cst = arith.constant dense<0.000000e+00> : vector<16x32xf32>
    %3 = tpu.matmul %2, %0, %cst {dimension_numbers = #tpu.dot_dimension_numbers<[1], [0], [0], [1], [0, 0, 1, 1], [], []>} : vector<16x216xf32>, vector<216x32xf32>, vector<16x32xf32> -> vector<16x32xf32>
    %c1 = arith.constant 1 : index
    %c0_4 = arith.constant 0 : index
    %c0_5 = arith.constant 0 : index
    %4 = vector.load %arg1[%c1, %c0_4, %c0_5] : memref<4x16x216xf32, #tpu.memory_space<vmem>>, vector<1x16x216xf32>
    %5 = vector.shape_cast %4 : vector<1x16x216xf32> to vector<16x216xf32>
    %cst_6 = arith.constant dense<0.000000e+00> : vector<16x32xf32>
    %6 = tpu.matmul %5, %0, %cst_6 {dimension_numbers = #tpu.dot_dimension_numbers<[1], [0], [0], [1], [0, 0, 1, 1], [], []>} : vector<16x216xf32>, vector<216x32xf32>, vector<16x32xf32> -> vector<16x32xf32>
    %c2 = arith.constant 2 : index
    %c0_7 = arith.constant 0 : index
    %c0_8 = arith.constant 0 : index
    %7 = vector.load %arg1[%c2, %c0_7, %c0_8] : memref<4x16x216xf32, #tpu.memory_space<vmem>>, vector<1x16x216xf32>
    %8 = vector.shape_cast %7 : vector<1x16x216xf32> to vector<16x216xf32>
    %cst_9 = arith.constant dense<0.000000e+00> : vector<16x32xf32>
    %9 = tpu.matmul %8, %0, %cst_9 {dimension_numbers = #tpu.dot_dimension_numbers<[1], [0], [0], [1], [0, 0, 1, 1], [], []>} : vector<16x216xf32>, vector<216x32xf32>, vector<16x32xf32> -> vector<16x32xf32>
    %c3 = arith.constant 3 : index
    %c0_10 = arith.constant 0 : index
    %c0_11 = arith.constant 0 : index
    %10 = vector.load %arg1[%c3, %c0_10, %c0_11] : memref<4x16x216xf32, #tpu.memory_space<vmem>>, vector<1x16x216xf32>
    %11 = vector.shape_cast %10 : vector<1x16x216xf32> to vector<16x216xf32>
    %cst_12 = arith.constant dense<0.000000e+00> : vector<16x32xf32>
    %12 = tpu.matmul %11, %0, %cst_12 {dimension_numbers = #tpu.dot_dimension_numbers<[1], [0], [0], [1], [0, 0, 1, 1], [], []>} : vector<16x216xf32>, vector<216x32xf32>, vector<16x32xf32> -> vector<16x32xf32>
    %13 = arith.addf %3, %6 : vector<16x32xf32>
    %14 = arith.addf %13, %9 : vector<16x32xf32>
    %15 = arith.addf %14, %12 : vector<16x32xf32>
    %cst_13 = arith.constant dense<0.000000e+00> : vector<16xf32>
    %16 = vector.multi_reduction <add>, %15, %cst_13 [1] : vector<16x32xf32> to vector<16xf32>
    %17 = vector.shape_cast %16 : vector<16xf32> to vector<16x1xf32>
    %cst_14 = arith.constant 1.280000e+02 : f32
    %18 = vector.broadcast %cst_14 : f32 to vector<16x1xf32>
    %19 = arith.divf %17, %18 : vector<16x1xf32>
    %20 = vector.broadcast %19 : vector<16x1xf32> to vector<16x32xf32>
    %21 = arith.subf %3, %20 : vector<16x32xf32>
    %22 = vector.broadcast %19 : vector<16x1xf32> to vector<16x32xf32>
    %23 = arith.subf %6, %22 : vector<16x32xf32>
    %24 = vector.broadcast %19 : vector<16x1xf32> to vector<16x32xf32>
    %25 = arith.subf %9, %24 : vector<16x32xf32>
    %26 = vector.broadcast %19 : vector<16x1xf32> to vector<16x32xf32>
    %27 = arith.subf %12, %26 : vector<16x32xf32>
    %28 = arith.mulf %21, %21 : vector<16x32xf32>
    %cst_15 = arith.constant dense<0.000000e+00> : vector<16xf32>
    %29 = vector.multi_reduction <add>, %28, %cst_15 [1] : vector<16x32xf32> to vector<16xf32>
    %30 = vector.shape_cast %29 : vector<16xf32> to vector<16x1xf32>
    %31 = arith.mulf %23, %23 : vector<16x32xf32>
    %cst_16 = arith.constant dense<0.000000e+00> : vector<16xf32>
    %32 = vector.multi_reduction <add>, %31, %cst_16 [1] : vector<16x32xf32> to vector<16xf32>
    %33 = vector.shape_cast %32 : vector<16xf32> to vector<16x1xf32>
    %34 = arith.addf %30, %33 : vector<16x1xf32>
    %35 = arith.mulf %25, %25 : vector<16x32xf32>
    %cst_17 = arith.constant dense<0.000000e+00> : vector<16xf32>
    %36 = vector.multi_reduction <add>, %35, %cst_17 [1] : vector<16x32xf32> to vector<16xf32>
    %37 = vector.shape_cast %36 : vector<16xf32> to vector<16x1xf32>
    %38 = arith.addf %34, %37 : vector<16x1xf32>
    %39 = arith.mulf %27, %27 : vector<16x32xf32>
    %cst_18 = arith.constant dense<0.000000e+00> : vector<16xf32>
    %40 = vector.multi_reduction <add>, %39, %cst_18 [1] : vector<16x32xf32> to vector<16xf32>
    %41 = vector.shape_cast %40 : vector<16xf32> to vector<16x1xf32>
    %42 = arith.addf %38, %41 : vector<16x1xf32>
    %cst_19 = arith.constant 1.280000e+02 : f32
    %43 = vector.broadcast %cst_19 : f32 to vector<16x1xf32>
    %44 = arith.divf %42, %43 : vector<16x1xf32>
    %c0_20 = arith.constant 0 : index
    %c0_21 = arith.constant 0 : index
    %45 = vector.load %arg2[%c0_20, %c0_21] : memref<16x1xf32, #tpu.memory_space<vmem>>, vector<16x1xf32>
    %cst_22 = arith.constant 9.99999974E-6 : f32
    %46 = vector.broadcast %cst_22 : f32 to vector<16x1xf32>
    %47 = arith.addf %44, %46 : vector<16x1xf32>
    %48 = math.rsqrt %47 : vector<16x1xf32>
    %49 = arith.mulf %45, %48 : vector<16x1xf32>
    %c0_23 = arith.constant 0 : index
    %c0_24 = arith.constant 0 : index
    %50 = vector.load %arg3[%c0_23, %c0_24] : memref<16x1xf32, #tpu.memory_space<vmem>>, vector<16x1xf32>
    %51 = vector.broadcast %49 : vector<16x1xf32> to vector<16x32xf32>
    %52 = arith.mulf %21, %51 : vector<16x32xf32>
    %53 = vector.broadcast %50 : vector<16x1xf32> to vector<16x32xf32>
    %54 = arith.addf %52, %53 : vector<16x32xf32>
    %cst_25 = arith.constant 0.000000e+00 : f32
    %55 = vector.broadcast %cst_25 : f32 to vector<16x32xf32>
    %56 = arith.maximumf %54, %55 : vector<16x32xf32>
    %57 = vector.broadcast %49 : vector<16x1xf32> to vector<16x32xf32>
    %58 = arith.mulf %23, %57 : vector<16x32xf32>
    %59 = vector.broadcast %50 : vector<16x1xf32> to vector<16x32xf32>
    %60 = arith.addf %58, %59 : vector<16x32xf32>
    %cst_26 = arith.constant 0.000000e+00 : f32
    %61 = vector.broadcast %cst_26 : f32 to vector<16x32xf32>
    %62 = arith.maximumf %60, %61 : vector<16x32xf32>
    %63 = vector.broadcast %49 : vector<16x1xf32> to vector<16x32xf32>
    %64 = arith.mulf %25, %63 : vector<16x32xf32>
    %65 = vector.broadcast %50 : vector<16x1xf32> to vector<16x32xf32>
    %66 = arith.addf %64, %65 : vector<16x32xf32>
    %cst_27 = arith.constant 0.000000e+00 : f32
    %67 = vector.broadcast %cst_27 : f32 to vector<16x32xf32>
    %68 = arith.maximumf %66, %67 : vector<16x32xf32>
    %69 = vector.broadcast %49 : vector<16x1xf32> to vector<16x32xf32>
    %70 = arith.mulf %27, %69 : vector<16x32xf32>
    %71 = vector.broadcast %50 : vector<16x1xf32> to vector<16x32xf32>
    %72 = arith.addf %70, %71 : vector<16x32xf32>
    %cst_28 = arith.constant 0.000000e+00 : f32
    %73 = vector.broadcast %cst_28 : f32 to vector<16x32xf32>
    %74 = arith.maximumf %72, %73 : vector<16x32xf32>
    %75 = arith.maximumf %56, %62 : vector<16x32xf32>
    %76 = arith.maximumf %68, %74 : vector<16x32xf32>
    %77 = arith.maximumf %75, %76 : vector<16x32xf32>
    %c0_29 = arith.constant 0 : index
    %c0_30 = arith.constant 0 : index
    %78 = vector.load %arg5[%c0_29, %c0_30] : memref<16x32xf32, #tpu.memory_space<vmem>>, vector<16x32xf32>
    tpu.vector_store %arg5[%c0_29, %c0_30], %77 {strides = array<i32>} : memref<16x32xf32, #tpu.memory_space<vmem>>, vector<16x32xf32>,
    return
  }
  func.func @transform_0(%arg0: i32) -> (i32, i32, i32) {
    %c0_i32 = arith.constant 0 : i32
    %c0_i32_0 = arith.constant 0 : i32
    %c0_i32_1 = arith.constant 0 : i32
    %c0_i32_2 = arith.constant 0 : i32
    return %c0_i32, %c0_i32_0, %c0_i32_1 : i32, i32, i32
  }
  func.func @transform_1(%arg0: i32) -> (i32, i32) {
    %c0_i32 = arith.constant 0 : i32
    %c0_i32_0 = arith.constant 0 : i32
    %c0_i32_1 = arith.constant 0 : i32
    return %c0_i32, %c0_i32_0 : i32, i32
  }
  func.func @transform_2(%arg0: i32) -> (i32, i32) {
    %c0_i32 = arith.constant 0 : i32
    %c0_i32_0 = arith.constant 0 : i32
    %c0_i32_1 = arith.constant 0 : i32
    return %c0_i32, %c0_i32_0 : i32, i32
  }
  func.func @transform_3(%arg0: i32) -> (i32, i32) {
    %c0_i32 = arith.constant 0 : i32
    %c0_i32_0 = arith.constant 0 : i32
    %c0_i32_1 = arith.constant 0 : i32
    return %c0_i32, %c0_i32_0 : i32, i32
  }
  func.func @transform_4(%arg0: i32) -> (i32, i32) {
    %c0_i32 = arith.constant 0 : i32
    %c0_i32_0 = arith.constant 0 : i32
    %c0_i32_1 = arith.constant 0 : i32
    return %c0_i32, %c0_i32_0 : i32, i32
  }
}

</mosaic_0001>

<llo_original>
// kernel: _lambda_.2
$region0: #{_lambda_.2}
  #allocation0 [shape = 'u32[]', space=smem, size = 0x4, offset = 0x4, fixed_abs, tag = 'smem constant byte address 0x4 - core index']
  #allocation1 [shape = 'u32[144,128]{1,0:T(1,128)}', space=vmem, size = 0x12000, scoped, tag = 'internal scratch']
  %s0 = inlined_call_operand.vmem [shape: f32[4,6,36], index: 0, kind: input, shape index: {}]
  %s1 = inlined_call_operand.vmem [shape: f32[6,1], index: 1, kind: input, shape index: {}]
  %s2 = inlined_call_operand.vmem [shape: f32[6,1], index: 2, kind: input, shape index: {}]
  %s3 = inlined_call_operand.vmem [shape: f32[36,288], index: 3, kind: input, shape index: {}]
  %s4 = inlined_call_operand.vmem [shape: f32[6,288], index: 4, kind: output, shape index: {}]
  %s5 = sld [smem:[#allocation0]]
  $region26: #{_lambda_.2} parent=0
    _
  %s7 = ssub.s32 1, %s5
  %s8 = scalar_select 0, %s7, %s5
  // Predicated region
  $region2: #{_lambda_.2} parent=0 // pred_check
    _
  $region3: #{_lambda_.2} parent=0 // pred_check_branch
    %10 = sbr.rel (0) target = $region5
  $region4: #{_lambda_.2} parent=0 // pred_region
    _
  $region5: #{_lambda_.2} parent=0 // pred_fallthru
    _
  // Predicated region
  $region6: #{_lambda_.2} parent=0 // pred_check
    _
  $region7: #{_lambda_.2} parent=0 // pred_check_branch
    %12 = sbr.rel (0) target = $region9
  $region8: #{_lambda_.2} parent=0 // pred_region
    _
  $region9: #{_lambda_.2} parent=0 // pred_fallthru
    _
  // Predicated region
  $region10: #{_lambda_.2} parent=0 // pred_check
    _
  $region11: #{_lambda_.2} parent=0 // pred_check_branch
    %14 = sbr.rel (0) target = $region13
  $region12: #{_lambda_.2} parent=0 // pred_region
    _
  $region13: #{_lambda_.2} parent=0 // pred_fallthru
    _
  // Predicated region
  $region14: #{_lambda_.2} parent=0 // pred_check
    _
  $region15: #{_lambda_.2} parent=0 // pred_check_branch
    %16 = sbr.rel (0) target = $region17
  $region16: #{_lambda_.2} parent=0 // pred_region
    _
  $region17: #{_lambda_.2} parent=0 // pred_fallthru
    _
  %v17 = vld [vmem:[%s3] sm:$0xff]
  %v18 = vld [vmem:[%s3 + $0x8] sm:$0xff]
  %v19 = vld [vmem:[%s3 + $0x10] sm:$0xff]
  %v20 = vld [vmem:[%s3 + $0x18] sm:$0xff]
  %v21 = vld [vmem:[%s3 + $0x20] sm:$0xff]
  %v22 = vld [vmem:[%s3 + $0x28] sm:$0xff]
  %v23 = vld [vmem:[%s3 + $0x30] sm:$0xff]
  %v24 = vld [vmem:[%s3 + $0x38] sm:$0xff]
  %v25 = vld [vmem:[%s3 + $0x40] sm:$0xff]
  %v26 = vld [vmem:[%s3 + $0x48] sm:$0xff]
  %v27 = vld [vmem:[%s3 + $0x50] sm:$0xff]
  %v28 = vld [vmem:[%s3 + $0x58] sm:$0xff]
  %v29 = vld [vmem:[%s3 + $0x60] sm:$0xf]
  %v30 = vld [vmem:[%s3 + $0x68] sm:$0xf]
  %v31 = vld [vmem:[%s3 + $0x70] sm:$0xf]
  %v32 = vld [vmem:[%s0] sm:$0x3f]
  %vm33 = vcmask 293888
  %v35 = vsel %vm33, %v32, 0
  %vm37 = vcmask 1043456
  %v39 = vsel %vm37, %v29, 0
  %v42 = vsel %vm37, %v30, 0
  %v45 = vsel %vm37, %v31, 0
  %47 = vmatprep.subr.mxu0 %v18
  %48 = vmatpush1.msra.mxu0 %v17
  %49 = vmatprep.subr.mxu0 %v21
  %50 = vmatpush1.msra.mxu0 %v20
  %51 = vmatprep.subr.mxu0 %v24
  %52 = vmatpush1.msra.mxu0 %v23
  %53 = vmatprep.subr.mxu0 %v27
  %54 = vmatpush1.msra.mxu0 %v26
  %55 = vmatprep.subr.mxu0 %v42
  %56 = vmatpush1.msra.mxu0 %v39
  %57 = vmatprep.subr.mxu0 0.0
  %58 = vmatpush1.msra.mxu0 0.0
  %59 = vmatprep.subr.mxu0 0.0
  %60 = vmatpush1.msra.mxu0 0.0
  %61 = vmatprep.subr.mxu0 0.0
  %62 = vmatpush1.msra.mxu0 0.0
  %63 = vmatprep.subr.mxu0 0.0
  %64 = vmatpush1.msra.mxu0 0.0
  %65 = vmatprep.subr.mxu0 0.0
  %66 = vmatpush1.msra.mxu0 0.0
  %67 = vmatprep.subr.mxu0 0.0
  %68 = vmatpush1.msra.mxu0 0.0
  %69 = vmatprep.subr.mxu0 0.0
  %70 = vmatpush1.msra.mxu0 0.0
  %71 = vmatprep.subr.mxu0 0.0
  %72 = vmatpush1.msra.mxu0 0.0
  %73 = vmatprep.subr.mxu0 0.0
  %74 = vmatpush1.msra.mxu0 0.0
  %75 = vmatprep.subr.mxu0 0.0
  %76 = vmatpush1.msra.mxu0 0.0
  %77 = vmatprep.subr.mxu0 0.0
  %78 = vmatpush1.msra.mxu0 0.0
  %79 = vmatprep.subr.mxu0 0.0
  %80 = vmatpush1.msra.mxu0 0.0
  %81 = vmatprep.subr.mxu0 0.0
  %82 = vmatpush1.msra.mxu0 0.0
  %83 = vmatprep.subr.mxu0 0.0
  %84 = vmatpush1.msra.mxu0 0.0
  %85 = vmatprep.subr.mxu0 0.0
  %86 = vmatpush1.msra.mxu0 0.0
  %87 = vmatprep.subr.mxu0 0.0
  %88 = vmatpush1.msra.mxu0 0.0
  %89 = vmatprep.subr.mxu0 0.0
  %90 = vmatpush1.msra.mxu0 0.0
  %91 = vmatprep.subr.mxu0 0.0
  %92 = vmatpush1.msra.mxu0 0.0
  %93 = vmatprep.subr.mxu0 0.0
  %94 = vmatpush1.msra.mxu0 0.0
  %95 = vmatprep.subr.mxu0 0.0
  %96 = vmatpush1.msra.mxu0 0.0
  %97 = vmatprep.subr.mxu0 0.0
  %98 = vmatpush1.msra.mxu0 0.0
  %99 = vmatprep.subr.mxu0 0.0
  %100 = vmatpush1.msra.mxu0 0.0
  %101 = vmatprep.subr.mxu0 0.0
  %102 = vmatpush1.msra.mxu0 0.0
  %103 = vmatprep.subr.mxu0 0.0
  %104 = vmatpush1.msra.mxu0 0.0
  %105 = vmatprep.subr.mxu0 0.0
  %106 = vmatpush1.msra.mxu0 0.0
  %107 = vmatprep.subr.mxu0 0.0
  %108 = vmatpush1.msra.mxu0 0.0
  %109 = vmatprep.subr.mxu0 0.0
  %110 = vmatpush1.msra.mxu0 0.0
  %111 = vmatprep.mubr.f32.mxu0 0.0
  %112 = vmatmul.mubr.f32.gmra.mrb[0].mxu0 %v35
  %v113 = vpop.f32.mrb[0].mxu0
  %v114 = vadd.f32 0.0, %v113
  %v115 = vpop.f32.mrb[0].mxu0
  %v116 = vadd.f32 0.0, %v115
  %117 = vdwg.mxu0
  %118 = vmatprep.subr.mxu0 0.0
  %119 = vmatpush1.msra.mxu0 %v19
  %120 = vmatprep.subr.mxu0 0.0
  %121 = vmatpush1.msra.mxu0 %v22
  %122 = vmatprep.subr.mxu0 0.0
  %123 = vmatpush1.msra.mxu0 %v25
  %124 = vmatprep.subr.mxu0 0.0
  %125 = vmatpush1.msra.mxu0 %v28
  %126 = vmatprep.subr.mxu0 0.0
  %127 = vmatpush1.msra.mxu0 %v45
  %128 = vmatprep.subr.mxu0 0.0
  %129 = vmatpush1.msra.mxu0 0.0
  %130 = vmatprep.subr.mxu0 0.0
  %131 = vmatpush1.msra.mxu0 0.0
  %132 = vmatprep.subr.mxu0 0.0
  %133 = vmatpush1.msra.mxu0 0.0
  %134 = vmatprep.subr.mxu0 0.0
  %135 = vmatpush1.msra.mxu0 0.0
  %136 = vmatprep.subr.mxu0 0.0
  %137 = vmatpush1.msra.mxu0 0.0
  %138 = vmatprep.subr.mxu0 0.0
  %139 = vmatpush1.msra.mxu0 0.0
  %140 = vmatprep.subr.mxu0 0.0
  %141 = vmatpush1.msra.mxu0 0.0
  %142 = vmatprep.subr.mxu0 0.0
  %143 = vmatpush1.msra.mxu0 0.0
  %144 = vmatprep.subr.mxu0 0.0
  %145 = vmatpush1.msra.mxu0 0.0
  %146 = vmatprep.subr.mxu0 0.0
  %147 = vmatpush1.msra.mxu0 0.0
  %148 = vmatprep.subr.mxu0 0.0
  %149 = vmatpush1.msra.mxu0 0.0
  %150 = vmatprep.subr.mxu0 0.0
  %151 = vmatpush1.msra.mxu0 0.0
  %152 = vmatprep.subr.mxu0 0.0
  %153 = vmatpush1.msra.mxu0 0.0
  %154 = vmatprep.subr.mxu0 0.0
  %155 = vmatpush1.msra.mxu0 0.0
  %156 = vmatprep.subr.mxu0 0.0
  %157 = vmatpush1.msra.mxu0 0.0
  %158 = vmatprep.subr.mxu0 0.0
  %159 = vmatpush1.msra.mxu0 0.0
  %160 = vmatprep.subr.mxu0 0.0
  %161 = vmatpush1.msra.mxu0 0.0
  %162 = vmatprep.subr.mxu0 0.0
  %163 = vmatpush1.msra.mxu0 0.0
  %164 = vmatprep.subr.mxu0 0.0
  %165 = vmatpush1.msra.mxu0 0.0
  %166 = vmatprep.subr.mxu0 0.0
  %167 = vmatpush1.msra.mxu0 0.0
  %168 = vmatprep.subr.mxu0 0.0
  %169 = vmatpush1.msra.mxu0 0.0
  %170 = vmatprep.subr.mxu0 0.0
  %171 = vmatpush1.msra.mxu0 0.0
  %172 = vmatprep.subr.mxu0 0.0
  %173 = vmatpush1.msra.mxu0 0.0
  %174 = vmatprep.subr.mxu0 0.0
  %175 = vmatpush1.msra.mxu0 0.0
  %176 = vmatprep.subr.mxu0 0.0
  %177 = vmatpush1.msra.mxu0 0.0
  %178 = vmatprep.subr.mxu0 0.0
  %179 = vmatpush1.msra.mxu0 0.0
  %180 = vmatprep.subr.mxu0 0.0
  %181 = vmatpush1.msra.mxu0 0.0
  %182 = vmatprep.mubr.f32.mxu0 0.0
  %183 = vmatmul.mubr.f32.gmra.mrb[0].mxu0 %v35
  %v184 = vpop.f32.mrb[0].mxu0
  %v185 = vadd.f32 0.0, %v184
  %v186 = vpop.f32.mrb[0].mxu0
  %187 = vdwg.mxu0
  %s188 = scalar_lea.vmem %s0, 8
  %v189 = vld [vmem:[%s188] sm:$0x3f]
  %v191 = vsel %vm33, %v189, 0
  %193 = vmatprep.subr.mxu0 %v18
  %194 = vmatpush1.msra.mxu0 %v17
  %195 = vmatprep.subr.mxu0 %v21
  %196 = vmatpush1.msra.mxu0 %v20
  %197 = vmatprep.subr.mxu0 %v24
  %198 = vmatpush1.msra.mxu0 %v23
  %199 = vmatprep.subr.mxu0 %v27
  %200 = vmatpush1.msra.mxu0 %v26
  %201 = vmatprep.subr.mxu0 %v42
  %202 = vmatpush1.msra.mxu0 %v39
  %203 = vmatprep.subr.mxu0 0.0
  %204 = vmatpush1.msra.mxu0 0.0
  %205 = vmatprep.subr.mxu0 0.0
  %206 = vmatpush1.msra.mxu0 0.0
  %207 = vmatprep.subr.mxu0 0.0
  %208 = vmatpush1.msra.mxu0 0.0
  %209 = vmatprep.subr.mxu0 0.0
  %210 = vmatpush1.msra.mxu0 0.0
  %211 = vmatprep.subr.mxu0 0.0
  %212 = vmatpush1.msra.mxu0 0.0
  %213 = vmatprep.subr.mxu0 0.0
  %214 = vmatpush1.msra.mxu0 0.0
  %215 = vmatprep.subr.mxu0 0.0
  %216 = vmatpush1.msra.mxu0 0.0
  %217 = vmatprep.subr.mxu0 0.0
  %218 = vmatpush1.msra.mxu0 0.0
  %219 = vmatprep.subr.mxu0 0.0
  %220 = vmatpush1.msra.mxu0 0.0
  %221 = vmatprep.subr.mxu0 0.0
  %222 = vmatpush1.msra.mxu0 0.0
  %223 = vmatprep.subr.mxu0 0.0
  %224 = vmatpush1.msra.mxu0 0.0
  %225 = vmatprep.subr.mxu0 0.0
  %226 = vmatpush1.msra.mxu0 0.0
  %227 = vmatprep.subr.mxu0 0.0
  %228 = vmatpush1.msra.mxu0 0.0
  %229 = vmatprep.subr.mxu0 0.0
  %230 = vmatpush1.msra.mxu0 0.0
  %231 = vmatprep.subr.mxu0 0.0
  %232 = vmatpush1.msra.mxu0 0.0
  %233 = vmatprep.subr.mxu0 0.0
  %234 = vmatpush1.msra.mxu0 0.0
  %235 = vmatprep.subr.mxu0 0.0
  %236 = vmatpush1.msra.mxu0 0.0
  %237 = vmatprep.subr.mxu0 0.0
  %238 = vmatpush1.msra.mxu0 0.0
  %239 = vmatprep.subr.mxu0 0.0
  %240 = vmatpush1.msra.mxu0 0.0
  %241 = vmatprep.subr.mxu0 0.0
  %242 = vmatpush1.msra.mxu0 0.0
  %243 = vmatprep.subr.mxu0 0.0
  %244 = vmatpush1.msra.mxu0 0.0
  %245 = vmatprep.subr.mxu0 0.0
  %246 = vmatpush1.msra.mxu0 0.0
  %247 = vmatprep.subr.mxu0 0.0
  %248 = vmatpush1.msra.mxu0 0.0
  %249 = vmatprep.subr.mxu0 0.0
  %250 = vmatpush1.msra.mxu0 0.0
  %251 = vmatprep.subr.mxu0 0.0
  %252 = vmatpush1.msra.mxu0 0.0
  %253 = vmatprep.subr.mxu0 0.0
  %254 = vmatpush1.msra.mxu0 0.0
  %255 = vmatprep.subr.mxu0 0.0
  %256 = vmatpush1.msra.mxu0 0.0
  %257 = vmatprep.mubr.f32.mxu0 0.0
  %258 = vmatmul.mubr.f32.gmra.mrb[0].mxu0 %v191
  %v259 = vpop.f32.mrb[0].mxu0
  %v260 = vadd.f32 0.0, %v259
  %v261 = vpop.f32.mrb[0].mxu0
  %v262 = vadd.f32 0.0, %v261
  %263 = vdwg.mxu0
  %264 = vmatprep.subr.mxu0 0.0
  %265 = vmatpush1.msra.mxu0 %v19
  %266 = vmatprep.subr.mxu0 0.0
  %267 = vmatpush1.msra.mxu0 %v22
  %268 = vmatprep.subr.mxu0 0.0
  %269 = vmatpush1.msra.mxu0 %v25
  %270 = vmatprep.subr.mxu0 0.0
  %271 = vmatpush1.msra.mxu0 %v28
  %272 = vmatprep.subr.mxu0 0.0
  %273 = vmatpush1.msra.mxu0 %v45
  %274 = vmatprep.subr.mxu0 0.0
  %275 = vmatpush1.msra.mxu0 0.0
  %276 = vmatprep.subr.mxu0 0.0
  %277 = vmatpush1.msra.mxu0 0.0
  %278 = vmatprep.subr.mxu0 0.0
  %279 = vmatpush1.msra.mxu0 0.0
  %280 = vmatprep.subr.mxu0 0.0
  %281 = vmatpush1.msra.mxu0 0.0
  %282 = vmatprep.subr.mxu0 0.0
  %283 = vmatpush1.msra.mxu0 0.0
  %284 = vmatprep.subr.mxu0 0.0
  %285 = vmatpush1.msra.mxu0 0.0
  %286 = vmatprep.subr.mxu0 0.0
  %287 = vmatpush1.msra.mxu0 0.0
  %288 = vmatprep.subr.mxu0 0.0
  %289 = vmatpush1.msra.mxu0 0.0
  %290 = vmatprep.subr.mxu0 0.0
  %291 = vmatpush1.msra.mxu0 0.0
  %292 = vmatprep.subr.mxu0 0.0
  %293 = vmatpush1.msra.mxu0 0.0
  %294 = vmatprep.subr.mxu0 0.0
  %295 = vmatpush1.msra.mxu0 0.0
  %296 = vmatprep.subr.mxu0 0.0
  %297 = vmatpush1.msra.mxu0 0.0
  %298 = vmatprep.subr.mxu0 0.0
  %299 = vmatpush1.msra.mxu0 0.0
  %300 = vmatprep.subr.mxu0 0.0
  %301 = vmatpush1.msra.mxu0 0.0
  %302 = vmatprep.subr.mxu0 0.0
  %303 = vmatpush1.msra.mxu0 0.0
  %304 = vmatprep.subr.mxu0 0.0
  %305 = vmatpush1.msra.mxu0 0.0
  %306 = vmatprep.subr.mxu0 0.0
  %307 = vmatpush1.msra.mxu0 0.0
  %308 = vmatprep.subr.mxu0 0.0
  %309 = vmatpush1.msra.mxu0 0.0
  %310 = vmatprep.subr.mxu0 0.0
  %311 = vmatpush1.msra.mxu0 0.0
  %312 = vmatprep.subr.mxu0 0.0
  %313 = vmatpush1.msra.mxu0 0.0
  %314 = vmatprep.subr.mxu0 0.0
  %315 = vmatpush1.msra.mxu0 0.0
  %316 = vmatprep.subr.mxu0 0.0
  %317 = vmatpush1.msra.mxu0 0.0
  %318 = vmatprep.subr.mxu0 0.0
  %319 = vmatpush1.msra.mxu0 0.0
  %320 = vmatprep.subr.mxu0 0.0
  %321 = vmatpush1.msra.mxu0 0.0
  %322 = vmatprep.subr.mxu0 0.0
  %323 = vmatpush1.msra.mxu0 0.0
  %324 = vmatprep.subr.mxu0 0.0
  %325 = vmatpush1.msra.mxu0 0.0
  %326 = vmatprep.subr.mxu0 0.0
  %327 = vmatpush1.msra.mxu0 0.0
  %328 = vmatprep.mubr.f32.mxu0 0.0
  %329 = vmatmul.mubr.f32.gmra.mrb[0].mxu0 %v191
  %v330 = vpop.f32.mrb[0].mxu0
  %v331 = vadd.f32 0.0, %v330
  %v332 = vpop.f32.mrb[0].mxu0
  %333 = vdwg.mxu0
  %s334 = scalar_lea.vmem %s0, 16
  %v335 = vld [vmem:[%s334] sm:$0x3f]
  %v337 = vsel %vm33, %v335, 0
  %339 = vmatprep.subr.mxu0 %v18
  %340 = vmatpush1.msra.mxu0 %v17
  %341 = vmatprep.subr.mxu0 %v21
  %342 = vmatpush1.msra.mxu0 %v20
  %343 = vmatprep.subr.mxu0 %v24
  %344 = vmatpush1.msra.mxu0 %v23
  %345 = vmatprep.subr.mxu0 %v27
  %346 = vmatpush1.msra.mxu0 %v26
  %347 = vmatprep.subr.mxu0 %v42
  %348 = vmatpush1.msra.mxu0 %v39
  %349 = vmatprep.subr.mxu0 0.0
  %350 = vmatpush1.msra.mxu0 0.0
  %351 = vmatprep.subr.mxu0 0.0
  %352 = vmatpush1.msra.mxu0 0.0
  %353 = vmatprep.subr.mxu0 0.0
  %354 = vmatpush1.msra.mxu0 0.0
  %355 = vmatprep.subr.mxu0 0.0
  %356 = vmatpush1.msra.mxu0 0.0
  %357 = vmatprep.subr.mxu0 0.0
  %358 = vmatpush1.msra.mxu0 0.0
  %359 = vmatprep.subr.mxu0 0.0
  %360 = vmatpush1.msra.mxu0 0.0
  %361 = vmatprep.subr.mxu0 0.0
  %362 = vmatpush1.msra.mxu0 0.0
  %363 = vmatprep.subr.mxu0 0.0
  %364 = vmatpush1.msra.mxu0 0.0
  %365 = vmatprep.subr.mxu0 0.0
  %366 = vmatpush1.msra.mxu0 0.0
  %367 = vmatprep.subr.mxu0 0.0
  %368 = vmatpush1.msra.mxu0 0.0
  %369 = vmatprep.subr.mxu0 0.0
  %370 = vmatpush1.msra.mxu0 0.0
  %371 = vmatprep.subr.mxu0 0.0
  %372 = vmatpush1.msra.mxu0 0.0
  %373 = vmatprep.subr.mxu0 0.0
  %374 = vmatpush1.msra.mxu0 0.0
  %375 = vmatprep.subr.mxu0 0.0
  %376 = vmatpush1.msra.mxu0 0.0
  %377 = vmatprep.subr.mxu0 0.0
  %378 = vmatpush1.msra.mxu0 0.0
  %379 = vmatprep.subr.mxu0 0.0
  %380 = vmatpush1.msra.mxu0 0.0
  %381 = vmatprep.subr.mxu0 0.0
  %382 = vmatpush1.msra.mxu0 0.0
  %383 = vmatprep.subr.mxu0 0.0
  %384 = vmatpush1.msra.mxu0 0.0
  %385 = vmatprep.subr.mxu0 0.0
  %386 = vmatpush1.msra.mxu0 0.0
  %387 = vmatprep.subr.mxu0 0.0
  %388 = vmatpush1.msra.mxu0 0.0
  %389 = vmatprep.subr.mxu0 0.0
  %390 = vmatpush1.msra.mxu0 0.0
  %391 = vmatprep.subr.mxu0 0.0
  %392 = vmatpush1.msra.mxu0 0.0
  %393 = vmatprep.subr.mxu0 0.0
  %394 = vmatpush1.msra.mxu0 0.0
  %395 = vmatprep.subr.mxu0 0.0
  %396 = vmatpush1.msra.mxu0 0.0
  %397 = vmatprep.subr.mxu0 0.0
  %398 = vmatpush1.msra.mxu0 0.0
  %399 = vmatprep.subr.mxu0 0.0
  %400 = vmatpush1.msra.mxu0 0.0
  %401 = vmatprep.subr.mxu0 0.0
  %402 = vmatpush1.msra.mxu0 0.0
  %403 = vmatprep.mubr.f32.mxu0 0.0
  %404 = vmatmul.mubr.f32.gmra.mrb[0].mxu0 %v337
  %v405 = vpop.f32.mrb[0].mxu0
  %v406 = vadd.f32 0.0, %v405
  %v407 = vpop.f32.mrb[0].mxu0
  %v408 = vadd.f32 0.0, %v407
  %409 = vdwg.mxu0
  %410 = vmatprep.subr.mxu0 0.0
  %411 = vmatpush1.msra.mxu0 %v19
  %412 = vmatprep.subr.mxu0 0.0
  %413 = vmatpush1.msra.mxu0 %v22
  %414 = vmatprep.subr.mxu0 0.0
  %415 = vmatpush1.msra.mxu0 %v25
  %416 = vmatprep.subr.mxu0 0.0
  %417 = vmatpush1.msra.mxu0 %v28
  %418 = vmatprep.subr.mxu0 0.0
  %419 = vmatpush1.msra.mxu0 %v45
  %420 = vmatprep.subr.mxu0 0.0
  %421 = vmatpush1.msra.mxu0 0.0
  %422 = vmatprep.subr.mxu0 0.0
  %423 = vmatpush1.msra.mxu0 0.0
  %424 = vmatprep.subr.mxu0 0.0
  %425 = vmatpush1.msra.mxu0 0.0
  %426 = vmatprep.subr.mxu0 0.0
  %427 = vmatpush1.msra.mxu0 0.0
  %428 = vmatprep.subr.mxu0 0.0
  %429 = vmatpush1.msra.mxu0 0.0
  %430 = vmatprep.subr.mxu0 0.0
  %431 = vmatpush1.msra.mxu0 0.0
  %432 = vmatprep.subr.mxu0 0.0
  %433 = vmatpush1.msra.mxu0 0.0
  %434 = vmatprep.subr.mxu0 0.0
  %435 = vmatpush1.msra.mxu0 0.0
  %436 = vmatprep.subr.mxu0 0.0
  %437 = vmatpush1.msra.mxu0 0.0
  %438 = vmatprep.subr.mxu0 0.0
  %439 = vmatpush1.msra.mxu0 0.0
  %440 = vmatprep.subr.mxu0 0.0
  %441 = vmatpush1.msra.mxu0 0.0
  %442 = vmatprep.subr.mxu0 0.0
  %443 = vmatpush1.msra.mxu0 0.0
  %444 = vmatprep.subr.mxu0 0.0
  %445 = vmatpush1.msra.mxu0 0.0
  %446 = vmatprep.subr.mxu0 0.0
  %447 = vmatpush1.msra.mxu0 0.0
  %448 = vmatprep.subr.mxu0 0.0
  %449 = vmatpush1.msra.mxu0 0.0
  %450 = vmatprep.subr.mxu0 0.0
  %451 = vmatpush1.msra.mxu0 0.0
  %452 = vmatprep.subr.mxu0 0.0
  %453 = vmatpush1.msra.mxu0 0.0
  %454 = vmatprep.subr.mxu0 0.0
  %455 = vmatpush1.msra.mxu0 0.0
  %456 = vmatprep.subr.mxu0 0.0
  %457 = vmatpush1.msra.mxu0 0.0
  %458 = vmatprep.subr.mxu0 0.0
  %459 = vmatpush1.msra.mxu0 0.0
  %460 = vmatprep.subr.mxu0 0.0
  %461 = vmatpush1.msra.mxu0 0.0
  %462 = vmatprep.subr.mxu0 0.0
  %463 = vmatpush1.msra.mxu0 0.0
  %464 = vmatprep.subr.mxu0 0.0
  %465 = vmatpush1.msra.mxu0 0.0
  %466 = vmatprep.subr.mxu0 0.0
  %467 = vmatpush1.msra.mxu0 0.0
  %468 = vmatprep.subr.mxu0 0.0
  %469 = vmatpush1.msra.mxu0 0.0
  %470 = vmatprep.subr.mxu0 0.0
  %471 = vmatpush1.msra.mxu0 0.0
  %472 = vmatprep.subr.mxu0 0.0
  %473 = vmatpush1.msra.mxu0 0.0
  %474 = vmatprep.mubr.f32.mxu0 0.0
  %475 = vmatmul.mubr.f32.gmra.mrb[0].mxu0 %v337
  %v476 = vpop.f32.mrb[0].mxu0
  %v477 = vadd.f32 0.0, %v476
  %v478 = vpop.f32.mrb[0].mxu0
  %479 = vdwg.mxu0
  %s480 = scalar_lea.vmem %s0, 24
  %v481 = vld [vmem:[%s480] sm:$0x3f]
  %v483 = vsel %vm33, %v481, 0
  %485 = vmatprep.subr.mxu0 %v18
  %486 = vmatpush1.msra.mxu0 %v17
  %487 = vmatprep.subr.mxu0 %v21
  %488 = vmatpush1.msra.mxu0 %v20
  %489 = vmatprep.subr.mxu0 %v24
  %490 = vmatpush1.msra.mxu0 %v23
  %491 = vmatprep.subr.mxu0 %v27
  %492 = vmatpush1.msra.mxu0 %v26
  %493 = vmatprep.subr.mxu0 %v42
  %494 = vmatpush1.msra.mxu0 %v39
  %495 = vmatprep.subr.mxu0 0.0
  %496 = vmatpush1.msra.mxu0 0.0
  %497 = vmatprep.subr.mxu0 0.0
  %498 = vmatpush1.msra.mxu0 0.0
  %499 = vmatprep.subr.mxu0 0.0
  %500 = vmatpush1.msra.mxu0 0.0
  %501 = vmatprep.subr.mxu0 0.0
  %502 = vmatpush1.msra.mxu0 0.0
  %503 = vmatprep.subr.mxu0 0.0
  %504 = vmatpush1.msra.mxu0 0.0
  %505 = vmatprep.subr.mxu0 0.0
  %506 = vmatpush1.msra.mxu0 0.0
  %507 = vmatprep.subr.mxu0 0.0
  %508 = vmatpush1.msra.mxu0 0.0
  %509 = vmatprep.subr.mxu0 0.0
  %510 = vmatpush1.msra.mxu0 0.0
  %511 = vmatprep.subr.mxu0 0.0
  %512 = vmatpush1.msra.mxu0 0.0
  %513 = vmatprep.subr.mxu0 0.0
  %514 = vmatpush1.msra.mxu0 0.0
  %515 = vmatprep.subr.mxu0 0.0
  %516 = vmatpush1.msra.mxu0 0.0
  %517 = vmatprep.subr.mxu0 0.0
  %518 = vmatpush1.msra.mxu0 0.0
  %519 = vmatprep.subr.mxu0 0.0
  %520 = vmatpush1.msra.mxu0 0.0
  %521 = vmatprep.subr.mxu0 0.0
  %522 = vmatpush1.msra.mxu0 0.0
  %523 = vmatprep.subr.mxu0 0.0
  %524 = vmatpush1.msra.mxu0 0.0
  %525 = vmatprep.subr.mxu0 0.0
  %526 = vmatpush1.msra.mxu0 0.0
  %527 = vmatprep.subr.mxu0 0.0
  %528 = vmatpush1.msra.mxu0 0.0
  %529 = vmatprep.subr.mxu0 0.0
  %530 = vmatpush1.msra.mxu0 0.0
  %531 = vmatprep.subr.mxu0 0.0
  %532 = vmatpush1.msra.mxu0 0.0
  %533 = vmatprep.subr.mxu0 0.0
  %534 = vmatpush1.msra.mxu0 0.0
  %535 = vmatprep.subr.mxu0 0.0
  %536 = vmatpush1.msra.mxu0 0.0
  %537 = vmatprep.subr.mxu0 0.0
  %538 = vmatpush1.msra.mxu0 0.0
  %539 = vmatprep.subr.mxu0 0.0
  %540 = vmatpush1.msra.mxu0 0.0
  %541 = vmatprep.subr.mxu0 0.0
  %542 = vmatpush1.msra.mxu0 0.0
  %543 = vmatprep.subr.mxu0 0.0
  %544 = vmatpush1.msra.mxu0 0.0
  %545 = vmatprep.subr.mxu0 0.0
  %546 = vmatpush1.msra.mxu0 0.0
  %547 = vmatprep.subr.mxu0 0.0
  %548 = vmatpush1.msra.mxu0 0.0
  %549 = vmatprep.mubr.f32.mxu0 0.0
  %550 = vmatmul.mubr.f32.gmra.mrb[0].mxu0 %v483
  %v551 = vpop.f32.mrb[0].mxu0
  %v552 = vadd.f32 0.0, %v551
  %v553 = vpop.f32.mrb[0].mxu0
  %v554 = vadd.f32 0.0, %v553
  %555 = vdwg.mxu0
  %556 = vmatprep.subr.mxu0 0.0
  %557 = vmatpush1.msra.mxu0 %v19
  %558 = vmatprep.subr.mxu0 0.0
  %559 = vmatpush1.msra.mxu0 %v22
  %560 = vmatprep.subr.mxu0 0.0
  %561 = vmatpush1.msra.mxu0 %v25
  %562 = vmatprep.subr.mxu0 0.0
  %563 = vmatpush1.msra.mxu0 %v28
  %564 = vmatprep.subr.mxu0 0.0
  %565 = vmatpush1.msra.mxu0 %v45
  %566 = vmatprep.subr.mxu0 0.0
  %567 = vmatpush1.msra.mxu0 0.0
  %568 = vmatprep.subr.mxu0 0.0
  %569 = vmatpush1.msra.mxu0 0.0
  %570 = vmatprep.subr.mxu0 0.0
  %571 = vmatpush1.msra.mxu0 0.0
  %572 = vmatprep.subr.mxu0 0.0
  %573 = vmatpush1.msra.mxu0 0.0
  %574 = vmatprep.subr.mxu0 0.0
  %575 = vmatpush1.msra.mxu0 0.0
  %576 = vmatprep.subr.mxu0 0.0
  %577 = vmatpush1.msra.mxu0 0.0
  %578 = vmatprep.subr.mxu0 0.0
  %579 = vmatpush1.msra.mxu0 0.0
  %580 = vmatprep.subr.mxu0 0.0
  %581 = vmatpush1.msra.mxu0 0.0
  %582 = vmatprep.subr.mxu0 0.0
  %583 = vmatpush1.msra.mxu0 0.0
  %584 = vmatprep.subr.mxu0 0.0
  %585 = vmatpush1.msra.mxu0 0.0
  %586 = vmatprep.subr.mxu0 0.0
  %587 = vmatpush1.msra.mxu0 0.0
  %588 = vmatprep.subr.mxu0 0.0
  %589 = vmatpush1.msra.mxu0 0.0
  %590 = vmatprep.subr.mxu0 0.0
  %591 = vmatpush1.msra.mxu0 0.0
  %592 = vmatprep.subr.mxu0 0.0
  %593 = vmatpush1.msra.mxu0 0.0
  %594 = vmatprep.subr.mxu0 0.0
  %595 = vmatpush1.msra.mxu0 0.0
  %596 = vmatprep.subr.mxu0 0.0
  %597 = vmatpush1.msra.mxu0 0.0
  %598 = vmatprep.subr.mxu0 0.0
  %599 = vmatpush1.msra.mxu0 0.0
  %600 = vmatprep.subr.mxu0 0.0
  %601 = vmatpush1.msra.mxu0 0.0
  %602 = vmatprep.subr.mxu0 0.0
  %603 = vmatpush1.msra.mxu0 0.0
  %604 = vmatprep.subr.mxu0 0.0
  %605 = vmatpush1.msra.mxu0 0.0
  %606 = vmatprep.subr.mxu0 0.0
  %607 = vmatpush1.msra.mxu0 0.0
  %608 = vmatprep.subr.mxu0 0.0
  %609 = vmatpush1.msra.mxu0 0.0
  %610 = vmatprep.subr.mxu0 0.0
  %611 = vmatpush1.msra.mxu0 0.0
  %612 = vmatprep.subr.mxu0 0.0
  %613 = vmatpush1.msra.mxu0 0.0
  %614 = vmatprep.subr.mxu0 0.0
  %615 = vmatpush1.msra.mxu0 0.0
  %616 = vmatprep.subr.mxu0 0.0
  %617 = vmatpush1.msra.mxu0 0.0
  %618 = vmatprep.subr.mxu0 0.0
  %619 = vmatpush1.msra.mxu0 0.0
  %620 = vmatprep.mubr.f32.mxu0 0.0
  %621 = vmatmul.mubr.f32.gmra.mrb[0].mxu0 %v483
  %v622 = vpop.f32.mrb[0].mxu0
  %v623 = vadd.f32 0.0, %v622
  %v624 = vpop.f32.mrb[0].mxu0
  %625 = vdwg.mxu0
  %v626 = vadd.f32 %v114, %v260
  %v627 = vadd.f32 %v116, %v262
  %v628 = vadd.f32 %v185, %v331
  %v629 = vadd.f32 %v626, %v406
  %v630 = vadd.f32 %v627, %v408
  %v631 = vadd.f32 %v628, %v477
  %v632 = vadd.f32 %v629, %v552
  %v633 = vadd.f32 %v630, %v554
  %v634 = vadd.f32 %v631, %v623
  %vm635 = vcmask 1045504
  %v636 = vsel %vm635, %v632, 0.0
  %v637 = vsel %vm635, %v633, 0.0
  %v638 = vadd.f32 %v636, %v637
  %vm639 = vcmask 259072
  %v640 = vsel %vm639, %v634, 0.0
  %v641 = vadd.f32 %v638, %v640
  %642 = vadd.xlane.f32.xlu0 %v641
  %v643 = vpop.xlane.xlu0 %642
  %v644 = vrcp.pop 1152.0
  %v645 = vmul.f32 %v643, %v644
  %v646 = vsub.f32 %v114, %v645
  %v647 = vsub.f32 %v116, %v645
  %v648 = vsub.f32 %v185, %v645
  %v649 = vsub.f32 %v260, %v645
  %v650 = vsub.f32 %v262, %v645
  %v651 = vsub.f32 %v331, %v645
  %v652 = vsub.f32 %v406, %v645
  %v653 = vsub.f32 %v408, %v645
  %v654 = vsub.f32 %v477, %v645
  %v655 = vsub.f32 %v552, %v645
  %v656 = vsub.f32 %v554, %v645
  %v657 = vsub.f32 %v623, %v645
  %v658 = vmul.f32 %v646, %v646
  %v659 = vmul.f32 %v647, %v647
  %v660 = vmul.f32 %v648, %v648
  %v661 = vsel %vm635, %v658, 0.0
  %v662 = vsel %vm635, %v659, 0.0
  %v663 = vadd.f32 %v661, %v662
  %v664 = vsel %vm639, %v660, 0.0
  %v665 = vadd.f32 %v663, %v664
  %666 = vadd.xlane.f32.xlu0 %v665
  %v667 = vpop.xlane.xlu0 %666
  %v668 = vmul.f32 %v649, %v649
  %v669 = vmul.f32 %v650, %v650
  %v670 = vmul.f32 %v651, %v651
  %v671 = vsel %vm635, %v668, 0.0
  %v672 = vsel %vm635, %v669, 0.0
  %v673 = vadd.f32 %v671, %v672
  %v674 = vsel %vm639, %v670, 0.0
  %v675 = vadd.f32 %v673, %v674
  %676 = vadd.xlane.f32.xlu0 %v675
  %v677 = vpop.xlane.xlu0 %676
  %v678 = vadd.f32 %v667, %v677
  %v679 = vmul.f32 %v652, %v652
  %v680 = vmul.f32 %v653, %v653
  %v681 = vmul.f32 %v654, %v654
  %v682 = vsel %vm635, %v679, 0.0
  %v683 = vsel %vm635, %v680, 0.0
  %v684 = vadd.f32 %v682, %v683
  %v685 = vsel %vm639, %v681, 0.0
  %v686 = vadd.f32 %v684, %v685
  %687 = vadd.xlane.f32.xlu0 %v686
  %v688 = vpop.xlane.xlu0 %687
  %v689 = vadd.f32 %v678, %v688
  %v690 = vmul.f32 %v655, %v655
  %v691 = vmul.f32 %v656, %v656
  %v692 = vmul.f32 %v657, %v657
  %v693 = vsel %vm635, %v690, 0.0
  %v694 = vsel %vm635, %v691, 0.0
  %v695 = vadd.f32 %v693, %v694
  %v696 = vsel %vm639, %v692, 0.0
  %v697 = vadd.f32 %v695, %v696
  %698 = vadd.xlane.f32.xlu0 %v697
  %v699 = vpop.xlane.xlu0 %698
  %v700 = vadd.f32 %v689, %v699
  %v701 = vmul.f32 %v700, %v644
  %v702 = vld [vmem:[%s1] sm:$0x3f]
  %v703 = vadd.f32 %v701, 1e-05
  %v704 = vrsqrt.pop %v703
  %v705 = vmul.f32 %v702, %v704
  %v706 = vld [vmem:[%s2] sm:$0x3f]
  %708 = vset.pattern.permute.xlu0 0
  %709 = vperm.xlu0 %708, %v705
  %v710 = vpop.permute.xlu0 %709
  %v712 = vmul.f32 %v646, %v710
  %v713 = vmul.f32 %v647, %v710
  %v714 = vmul.f32 %v648, %v710
  %716 = vset.pattern.permute.xlu0 0
  %717 = vperm.xlu0 %716, %v706
  %v718 = vpop.permute.xlu0 %717
  %v720 = vadd.f32 %v712, %v718
  %v721 = vadd.f32 %v713, %v718
  %v722 = vadd.f32 %v714, %v718
  %v723 = vmax.f32 %v720, 0.0
  %v724 = vmax.f32 %v721, 0.0
  %v725 = vmax.f32 %v722, 0.0
  %v726 = vmul.f32 %v649, %v710
  %v727 = vmul.f32 %v650, %v710
  %v728 = vmul.f32 %v651, %v710
  %v729 = vadd.f32 %v726, %v718
  %v730 = vadd.f32 %v727, %v718
  %v731 = vadd.f32 %v728, %v718
  %v732 = vmax.f32 %v729, 0.0
  %v733 = vmax.f32 %v730, 0.0
  %v734 = vmax.f32 %v731, 0.0
  %v735 = vmul.f32 %v652, %v710
  %v736 = vmul.f32 %v653, %v710
  %v737 = vmul.f32 %v654, %v710
  %v738 = vadd.f32 %v735, %v718
  %v739 = vadd.f32 %v736, %v718
  %v740 = vadd.f32 %v737, %v718
  %v741 = vmax.f32 %v738, 0.0
  %v742 = vmax.f32 %v739, 0.0
  %v743 = vmax.f32 %v740, 0.0
  %v744 = vmul.f32 %v655, %v710
  %v745 = vmul.f32 %v656, %v710
  %v746 = vmul.f32 %v657, %v710
  %v747 = vadd.f32 %v744, %v718
  %v748 = vadd.f32 %v745, %v718
  %v749 = vadd.f32 %v746, %v718
  %v750 = vmax.f32 %v747, 0.0
  %v751 = vmax.f32 %v748, 0.0
  %v752 = vmax.f32 %v749, 0.0
  %v753 = vmax.f32 %v723, %v732
  %v754 = vmax.f32 %v724, %v733
  %v755 = vmax.f32 %v725, %v734
  %v756 = vmax.f32 %v741, %v750
  %v757 = vmax.f32 %v742, %v751
  %v758 = vmax.f32 %v743, %v752
  %v759 = vmax.f32 %v753, %v756
  %v760 = vmax.f32 %v754, %v757
  %v761 = vmax.f32 %v755, %v758
  %762 = vst [vmem:[%s4] sm:$0x3f] %v759
  %763 = vst [vmem:[%s4 + $0x8] sm:$0x3f] %v760
  %764 = vst.msk [vmem:[%s4 + $0x10] sm:$0x3f] %vm639, %v761
  // Predicated region
  $region18: #{_lambda_.2} parent=0 // pred_check
    _
  $region19: #{_lambda_.2} parent=0 // pred_check_branch
    %766 = sbr.rel (0) target = $region21
  $region20: #{_lambda_.2} parent=0 // pred_region
    _
  $region21: #{_lambda_.2} parent=0 // pred_fallthru
    _
  // Predicated region
  $region22: #{_lambda_.2} parent=0 // pred_check
    _
  $region23: #{_lambda_.2} parent=0 // pred_check_branch
    %768 = sbr.rel (0) target = $region25
  $region24: #{_lambda_.2} parent=0 // pred_region
    _
  $region25: #{_lambda_.2} parent=0 // pred_fallthru
    _

// kernel: _lambda_.3
$region0: #{_lambda_.3}
  #allocation0 [shape = 'u32[]', space=smem, size = 0x4, offset = 0x4, fixed_abs, tag = 'smem constant byte address 0x4 - core index']
  #allocation1 [shape = 'u32[144,128]{1,0:T(1,128)}', space=vmem, size = 0x12000, scoped, tag = 'internal scratch']
  %s0 = inlined_call_operand.vmem [shape: f32[4,16,216], index: 0, kind: input, shape index: {}]
  %s1 = inlined_call_operand.vmem [shape: f32[16,1], index: 1, kind: input, shape index: {}]
  %s2 = inlined_call_operand.vmem [shape: f32[16,1], index: 2, kind: input, shape index: {}]
  %s3 = inlined_call_operand.vmem [shape: f32[216,32], index: 3, kind: input, shape index: {}]
  %s4 = inlined_call_operand.vmem [shape: f32[16,32], index: 4, kind: output, shape index: {}]
  %s5 = sld [smem:[#allocation0]]
  $region26: #{_lambda_.3} parent=0
    _
  %s7 = ssub.s32 1, %s5
  %s8 = scalar_select 0, %s7, %s5
  // Predicated region
  $region2: #{_lambda_.3} parent=0 // pred_check
    _
  $region3: #{_lambda_.3} parent=0 // pred_check_branch
    %10 = sbr.rel (0) target = $region5
  $region4: #{_lambda_.3} parent=0 // pred_region
    _
  $region5: #{_lambda_.3} parent=0 // pred_fallthru
    _
  // Predicated region
  $region6: #{_lambda_.3} parent=0 // pred_check
    _
  $region7: #{_lambda_.3} parent=0 // pred_check_branch
    %12 = sbr.rel (0) target = $region9
  $region8: #{_lambda_.3} parent=0 // pred_region
    _
  $region9: #{_lambda_.3} parent=0 // pred_fallthru
    _
  // Predicated region
  $region10: #{_lambda_.3} parent=0 // pred_check
    _
  $region11: #{_lambda_.3} parent=0 // pred_check_branch
    %14 = sbr.rel (0) target = $region13
  $region12: #{_lambda_.3} parent=0 // pred_region
    _
  $region13: #{_lambda_.3} parent=0 // pred_fallthru
    _
  // Predicated region
  $region14: #{_lambda_.3} parent=0 // pred_check
    _
  $region15: #{_lambda_.3} parent=0 // pred_check_branch
    %16 = sbr.rel (0) target = $region17
  $region16: #{_lambda_.3} parent=0 // pred_region
    _
  $region17: #{_lambda_.3} parent=0 // pred_fallthru
    _
  %v17 = vld [vmem:[%s3] sm:$0xff]
  %v18 = vld [vmem:[%s3 + $0x8] sm:$0xff]
  %v19 = vld [vmem:[%s3 + $0x10] sm:$0xff]
  %v20 = vld [vmem:[%s3 + $0x18] sm:$0xff]
  %v21 = vld [vmem:[%s3 + $0x20] sm:$0xff]
  %v22 = vld [vmem:[%s3 + $0x28] sm:$0xff]
  %v23 = vld [vmem:[%s3 + $0x30] sm:$0xff]
  %v24 = vld [vmem:[%s3 + $0x38] sm:$0xff]
  %v25 = vld [vmem:[%s3 + $0x40] sm:$0xff]
  %v26 = vld [vmem:[%s3 + $0x48] sm:$0xff]
  %v27 = vld [vmem:[%s3 + $0x50] sm:$0xff]
  %v28 = vld [vmem:[%s3 + $0x58] sm:$0xff]
  %v29 = vld [vmem:[%s3 + $0x60] sm:$0xff]
  %v30 = vld [vmem:[%s3 + $0x68] sm:$0xff]
  %v31 = vld [vmem:[%s3 + $0x70] sm:$0xff]
  %v32 = vld [vmem:[%s3 + $0x78] sm:$0xff]
  %v33 = vld [vmem:[%s3 + $0x80] sm:$0xff]
  %v34 = vld [vmem:[%s3 + $0x88] sm:$0xff]
  %v35 = vld [vmem:[%s3 + $0x90] sm:$0xff]
  %v36 = vld [vmem:[%s3 + $0x98] sm:$0xff]
  %v37 = vld [vmem:[%s3 + $0xa0] sm:$0xff]
  %v38 = vld [vmem:[%s3 + $0xa8] sm:$0xff]
  %v39 = vld [vmem:[%s3 + $0xb0] sm:$0xff]
  %v40 = vld [vmem:[%s3 + $0xb8] sm:$0xff]
  %v41 = vld [vmem:[%s3 + $0xc0] sm:$0xff]
  %v42 = vld [vmem:[%s3 + $0xc8] sm:$0xff]
  %v43 = vld [vmem:[%s3 + $0xd0] sm:$0xff]
  %v44 = vld [vmem:[%s0] sm:$0xff]
  %v45 = vld [vmem:[%s0 + $0x8] sm:$0xff]
  %v46 = vld [vmem:[%s0 + $0x10] sm:$0xff]
  %v47 = vld [vmem:[%s0 + $0x18] sm:$0xff]
  %vm48 = vcmask 719872
  %v50 = vsel %vm48, %v45, 0
  %v53 = vsel %vm48, %v47, 0
  %55 = vmatprep.subr.mxu0 0.0
  %56 = vmatpush1.msra.mxu0 %v17
  %57 = vmatprep.subr.mxu0 0.0
  %58 = vmatpush1.msra.mxu0 %v18
  %59 = vmatprep.subr.mxu0 0.0
  %60 = vmatpush1.msra.mxu0 %v19
  %61 = vmatprep.subr.mxu0 0.0
  %62 = vmatpush1.msra.mxu0 %v20
  %63 = vmatprep.subr.mxu0 0.0
  %64 = vmatpush1.msra.mxu0 %v21
  %65 = vmatprep.subr.mxu0 0.0
  %66 = vmatpush1.msra.mxu0 %v22
  %67 = vmatprep.subr.mxu0 0.0
  %68 = vmatpush1.msra.mxu0 %v23
  %69 = vmatprep.subr.mxu0 0.0
  %70 = vmatpush1.msra.mxu0 %v24
  %71 = vmatprep.subr.mxu0 0.0
  %72 = vmatpush1.msra.mxu0 %v25
  %73 = vmatprep.subr.mxu0 0.0
  %74 = vmatpush1.msra.mxu0 %v26
  %75 = vmatprep.subr.mxu0 0.0
  %76 = vmatpush1.msra.mxu0 %v27
  %77 = vmatprep.subr.mxu0 0.0
  %78 = vmatpush1.msra.mxu0 %v28
  %79 = vmatprep.subr.mxu0 0.0
  %80 = vmatpush1.msra.mxu0 %v29
  %81 = vmatprep.subr.mxu0 0.0
  %82 = vmatpush1.msra.mxu0 %v30
  %83 = vmatprep.subr.mxu0 0.0
  %84 = vmatpush1.msra.mxu0 %v31
  %85 = vmatprep.subr.mxu0 0.0
  %86 = vmatpush1.msra.mxu0 %v32
  %87 = vmatprep.subr.mxu0 0.0
  %88 = vmatpush1.msra.mxu0 %v33
  %89 = vmatprep.subr.mxu0 0.0
  %90 = vmatpush1.msra.mxu0 %v34
  %91 = vmatprep.subr.mxu0 0.0
  %92 = vmatpush1.msra.mxu0 %v35
  %93 = vmatprep.subr.mxu0 0.0
  %94 = vmatpush1.msra.mxu0 %v36
  %95 = vmatprep.subr.mxu0 0.0
  %96 = vmatpush1.msra.mxu0 %v37
  %97 = vmatprep.subr.mxu0 0.0
  %98 = vmatpush1.msra.mxu0 %v38
  %99 = vmatprep.subr.mxu0 0.0
  %100 = vmatpush1.msra.mxu0 %v39
  %101 = vmatprep.subr.mxu0 0.0
  %102 = vmatpush1.msra.mxu0 %v40
  %103 = vmatprep.subr.mxu0 0.0
  %104 = vmatpush1.msra.mxu0 %v41
  %105 = vmatprep.subr.mxu0 0.0
  %106 = vmatpush1.msra.mxu0 %v42
  %107 = vmatprep.subr.mxu0 0.0
  %108 = vmatpush1.msra.mxu0 %v43
  %109 = vmatprep.subr.mxu0 0.0
  %110 = vmatpush1.msra.mxu0 0.0
  %111 = vmatprep.subr.mxu0 0.0
  %112 = vmatpush1.msra.mxu0 0.0
  %113 = vmatprep.subr.mxu0 0.0
  %114 = vmatpush1.msra.mxu0 0.0
  %115 = vmatprep.subr.mxu0 0.0
  %116 = vmatpush1.msra.mxu0 0.0
  %117 = vmatprep.subr.mxu0 0.0
  %118 = vmatpush1.msra.mxu0 0.0
  %119 = vmatprep.mubr.f32.mxu0 %v50
  %120 = vmatmul.mubr.f32.gmra.mrb[0].mxu0 %v44
  %v121 = vpop.f32.mrb[0].mxu0
  %v122 = vadd.f32 0.0, %v121
  %v123 = vpop.f32.mrb[0].mxu0
  %124 = vmatprep.mubr.f32.mxu0 %v53
  %125 = vmatmul.mubr.f32.gmra.mrb[0].mxu0 %v46
  %v126 = vpop.f32.mrb[0].mxu0
  %v127 = vadd.f32 0.0, %v126
  %v128 = vpop.f32.mrb[0].mxu0
  %129 = vdwg.mxu0
  %s130 = scalar_lea.vmem %s0, 32
  %v131 = vld [vmem:[%s130] sm:$0xff]
  %v132 = vld [vmem:[%s130 + $0x8] sm:$0xff]
  %v133 = vld [vmem:[%s130 + $0x10] sm:$0xff]
  %v134 = vld [vmem:[%s130 + $0x18] sm:$0xff]
  %v136 = vsel %vm48, %v132, 0
  %v139 = vsel %vm48, %v134, 0
  %141 = vmatprep.subr.mxu0 0.0
  %142 = vmatpush1.msra.mxu0 %v17
  %143 = vmatprep.subr.mxu0 0.0
  %144 = vmatpush1.msra.mxu0 %v18
  %145 = vmatprep.subr.mxu0 0.0
  %146 = vmatpush1.msra.mxu0 %v19
  %147 = vmatprep.subr.mxu0 0.0
  %148 = vmatpush1.msra.mxu0 %v20
  %149 = vmatprep.subr.mxu0 0.0
  %150 = vmatpush1.msra.mxu0 %v21
  %151 = vmatprep.subr.mxu0 0.0
  %152 = vmatpush1.msra.mxu0 %v22
  %153 = vmatprep.subr.mxu0 0.0
  %154 = vmatpush1.msra.mxu0 %v23
  %155 = vmatprep.subr.mxu0 0.0
  %156 = vmatpush1.msra.mxu0 %v24
  %157 = vmatprep.subr.mxu0 0.0
  %158 = vmatpush1.msra.mxu0 %v25
  %159 = vmatprep.subr.mxu0 0.0
  %160 = vmatpush1.msra.mxu0 %v26
  %161 = vmatprep.subr.mxu0 0.0
  %162 = vmatpush1.msra.mxu0 %v27
  %163 = vmatprep.subr.mxu0 0.0
  %164 = vmatpush1.msra.mxu0 %v28
  %165 = vmatprep.subr.mxu0 0.0
  %166 = vmatpush1.msra.mxu0 %v29
  %167 = vmatprep.subr.mxu0 0.0
  %168 = vmatpush1.msra.mxu0 %v30
  %169 = vmatprep.subr.mxu0 0.0
  %170 = vmatpush1.msra.mxu0 %v31
  %171 = vmatprep.subr.mxu0 0.0
  %172 = vmatpush1.msra.mxu0 %v32
  %173 = vmatprep.subr.mxu0 0.0
  %174 = vmatpush1.msra.mxu0 %v33
  %175 = vmatprep.subr.mxu0 0.0
  %176 = vmatpush1.msra.mxu0 %v34
  %177 = vmatprep.subr.mxu0 0.0
  %178 = vmatpush1.msra.mxu0 %v35
  %179 = vmatprep.subr.mxu0 0.0
  %180 = vmatpush1.msra.mxu0 %v36
  %181 = vmatprep.subr.mxu0 0.0
  %182 = vmatpush1.msra.mxu0 %v37
  %183 = vmatprep.subr.mxu0 0.0
  %184 = vmatpush1.msra.mxu0 %v38
  %185 = vmatprep.subr.mxu0 0.0
  %186 = vmatpush1.msra.mxu0 %v39
  %187 = vmatprep.subr.mxu0 0.0
  %188 = vmatpush1.msra.mxu0 %v40
  %189 = vmatprep.subr.mxu0 0.0
  %190 = vmatpush1.msra.mxu0 %v41
  %191 = vmatprep.subr.mxu0 0.0
  %192 = vmatpush1.msra.mxu0 %v42
  %193 = vmatprep.subr.mxu0 0.0
  %194 = vmatpush1.msra.mxu0 %v43
  %195 = vmatprep.subr.mxu0 0.0
  %196 = vmatpush1.msra.mxu0 0.0
  %197 = vmatprep.subr.mxu0 0.0
  %198 = vmatpush1.msra.mxu0 0.0
  %199 = vmatprep.subr.mxu0 0.0
  %200 = vmatpush1.msra.mxu0 0.0
  %201 = vmatprep.subr.mxu0 0.0
  %202 = vmatpush1.msra.mxu0 0.0
  %203 = vmatprep.subr.mxu0 0.0
  %204 = vmatpush1.msra.mxu0 0.0
  %205 = vmatprep.mubr.f32.mxu0 %v136
  %206 = vmatmul.mubr.f32.gmra.mrb[0].mxu0 %v131
  %v207 = vpop.f32.mrb[0].mxu0
  %v208 = vadd.f32 0.0, %v207
  %v209 = vpop.f32.mrb[0].mxu0
  %210 = vmatprep.mubr.f32.mxu0 %v139
  %211 = vmatmul.mubr.f32.gmra.mrb[0].mxu0 %v133
  %v212 = vpop.f32.mrb[0].mxu0
  %v213 = vadd.f32 0.0, %v212
  %v214 = vpop.f32.mrb[0].mxu0
  %215 = vdwg.mxu0
  %s216 = scalar_lea.vmem %s0, 64
  %v217 = vld [vmem:[%s216] sm:$0xff]
  %v218 = vld [vmem:[%s216 + $0x8] sm:$0xff]
  %v219 = vld [vmem:[%s216 + $0x10] sm:$0xff]
  %v220 = vld [vmem:[%s216 + $0x18] sm:$0xff]
  %v222 = vsel %vm48, %v218, 0
  %v225 = vsel %vm48, %v220, 0
  %227 = vmatprep.subr.mxu0 0.0
  %228 = vmatpush1.msra.mxu0 %v17
  %229 = vmatprep.subr.mxu0 0.0
  %230 = vmatpush1.msra.mxu0 %v18
  %231 = vmatprep.subr.mxu0 0.0
  %232 = vmatpush1.msra.mxu0 %v19
  %233 = vmatprep.subr.mxu0 0.0
  %234 = vmatpush1.msra.mxu0 %v20
  %235 = vmatprep.subr.mxu0 0.0
  %236 = vmatpush1.msra.mxu0 %v21
  %237 = vmatprep.subr.mxu0 0.0
  %238 = vmatpush1.msra.mxu0 %v22
  %239 = vmatprep.subr.mxu0 0.0
  %240 = vmatpush1.msra.mxu0 %v23
  %241 = vmatprep.subr.mxu0 0.0
  %242 = vmatpush1.msra.mxu0 %v24
  %243 = vmatprep.subr.mxu0 0.0
  %244 = vmatpush1.msra.mxu0 %v25
  %245 = vmatprep.subr.mxu0 0.0
  %246 = vmatpush1.msra.mxu0 %v26
  %247 = vmatprep.subr.mxu0 0.0
  %248 = vmatpush1.msra.mxu0 %v27
  %249 = vmatprep.subr.mxu0 0.0
  %250 = vmatpush1.msra.mxu0 %v28
  %251 = vmatprep.subr.mxu0 0.0
  %252 = vmatpush1.msra.mxu0 %v29
  %253 = vmatprep.subr.mxu0 0.0
  %254 = vmatpush1.msra.mxu0 %v30
  %255 = vmatprep.subr.mxu0 0.0
  %256 = vmatpush1.msra.mxu0 %v31
  %257 = vmatprep.subr.mxu0 0.0
  %258 = vmatpush1.msra.mxu0 %v32
  %259 = vmatprep.subr.mxu0 0.0
  %260 = vmatpush1.msra.mxu0 %v33
  %261 = vmatprep.subr.mxu0 0.0
  %262 = vmatpush1.msra.mxu0 %v34
  %263 = vmatprep.subr.mxu0 0.0
  %264 = vmatpush1.msra.mxu0 %v35
  %265 = vmatprep.subr.mxu0 0.0
  %266 = vmatpush1.msra.mxu0 %v36
  %267 = vmatprep.subr.mxu0 0.0
  %268 = vmatpush1.msra.mxu0 %v37
  %269 = vmatprep.subr.mxu0 0.0
  %270 = vmatpush1.msra.mxu0 %v38
  %271 = vmatprep.subr.mxu0 0.0
  %272 = vmatpush1.msra.mxu0 %v39
  %273 = vmatprep.subr.mxu0 0.0
  %274 = vmatpush1.msra.mxu0 %v40
  %275 = vmatprep.subr.mxu0 0.0
  %276 = vmatpush1.msra.mxu0 %v41
  %277 = vmatprep.subr.mxu0 0.0
  %278 = vmatpush1.msra.mxu0 %v42
  %279 = vmatprep.subr.mxu0 0.0
  %280 = vmatpush1.msra.mxu0 %v43
  %281 = vmatprep.subr.mxu0 0.0
  %282 = vmatpush1.msra.mxu0 0.0
  %283 = vmatprep.subr.mxu0 0.0
  %284 = vmatpush1.msra.mxu0 0.0
  %285 = vmatprep.subr.mxu0 0.0
  %286 = vmatpush1.msra.mxu0 0.0
  %287 = vmatprep.subr.mxu0 0.0
  %288 = vmatpush1.msra.mxu0 0.0
  %289 = vmatprep.subr.mxu0 0.0
  %290 = vmatpush1.msra.mxu0 0.0
  %291 = vmatprep.mubr.f32.mxu0 %v222
  %292 = vmatmul.mubr.f32.gmra.mrb[0].mxu0 %v217
  %v293 = vpop.f32.mrb[0].mxu0
  %v294 = vadd.f32 0.0, %v293
  %v295 = vpop.f32.mrb[0].mxu0
  %296 = vmatprep.mubr.f32.mxu0 %v225
  %297 = vmatmul.mubr.f32.gmra.mrb[0].mxu0 %v219
  %v298 = vpop.f32.mrb[0].mxu0
  %v299 = vadd.f32 0.0, %v298
  %v300 = vpop.f32.mrb[0].mxu0
  %301 = vdwg.mxu0
  %s302 = scalar_lea.vmem %s0, 96
  %v303 = vld [vmem:[%s302] sm:$0xff]
  %v304 = vld [vmem:[%s302 + $0x8] sm:$0xff]
  %v305 = vld [vmem:[%s302 + $0x10] sm:$0xff]
  %v306 = vld [vmem:[%s302 + $0x18] sm:$0xff]
  %v308 = vsel %vm48, %v304, 0
  %v311 = vsel %vm48, %v306, 0
  %313 = vmatprep.subr.mxu0 0.0
  %314 = vmatpush1.msra.mxu0 %v17
  %315 = vmatprep.subr.mxu0 0.0
  %316 = vmatpush1.msra.mxu0 %v18
  %317 = vmatprep.subr.mxu0 0.0
  %318 = vmatpush1.msra.mxu0 %v19
  %319 = vmatprep.subr.mxu0 0.0
  %320 = vmatpush1.msra.mxu0 %v20
  %321 = vmatprep.subr.mxu0 0.0
  %322 = vmatpush1.msra.mxu0 %v21
  %323 = vmatprep.subr.mxu0 0.0
  %324 = vmatpush1.msra.mxu0 %v22
  %325 = vmatprep.subr.mxu0 0.0
  %326 = vmatpush1.msra.mxu0 %v23
  %327 = vmatprep.subr.mxu0 0.0
  %328 = vmatpush1.msra.mxu0 %v24
  %329 = vmatprep.subr.mxu0 0.0
  %330 = vmatpush1.msra.mxu0 %v25
  %331 = vmatprep.subr.mxu0 0.0
  %332 = vmatpush1.msra.mxu0 %v26
  %333 = vmatprep.subr.mxu0 0.0
  %334 = vmatpush1.msra.mxu0 %v27
  %335 = vmatprep.subr.mxu0 0.0
  %336 = vmatpush1.msra.mxu0 %v28
  %337 = vmatprep.subr.mxu0 0.0
  %338 = vmatpush1.msra.mxu0 %v29
  %339 = vmatprep.subr.mxu0 0.0
  %340 = vmatpush1.msra.mxu0 %v30
  %341 = vmatprep.subr.mxu0 0.0
  %342 = vmatpush1.msra.mxu0 %v31
  %343 = vmatprep.subr.mxu0 0.0
  %344 = vmatpush1.msra.mxu0 %v32
  %345 = vmatprep.subr.mxu0 0.0
  %346 = vmatpush1.msra.mxu0 %v33
  %347 = vmatprep.subr.mxu0 0.0
  %348 = vmatpush1.msra.mxu0 %v34
  %349 = vmatprep.subr.mxu0 0.0
  %350 = vmatpush1.msra.mxu0 %v35
  %351 = vmatprep.subr.mxu0 0.0
  %352 = vmatpush1.msra.mxu0 %v36
  %353 = vmatprep.subr.mxu0 0.0
  %354 = vmatpush1.msra.mxu0 %v37
  %355 = vmatprep.subr.mxu0 0.0
  %356 = vmatpush1.msra.mxu0 %v38
  %357 = vmatprep.subr.mxu0 0.0
  %358 = vmatpush1.msra.mxu0 %v39
  %359 = vmatprep.subr.mxu0 0.0
  %360 = vmatpush1.msra.mxu0 %v40
  %361 = vmatprep.subr.mxu0 0.0
  %362 = vmatpush1.msra.mxu0 %v41
  %363 = vmatprep.subr.mxu0 0.0
  %364 = vmatpush1.msra.mxu0 %v42
  %365 = vmatprep.subr.mxu0 0.0
  %366 = vmatpush1.msra.mxu0 %v43
  %367 = vmatprep.subr.mxu0 0.0
  %368 = vmatpush1.msra.mxu0 0.0
  %369 = vmatprep.subr.mxu0 0.0
  %370 = vmatpush1.msra.mxu0 0.0
  %371 = vmatprep.subr.mxu0 0.0
  %372 = vmatpush1.msra.mxu0 0.0
  %373 = vmatprep.subr.mxu0 0.0
  %374 = vmatpush1.msra.mxu0 0.0
  %375 = vmatprep.subr.mxu0 0.0
  %376 = vmatpush1.msra.mxu0 0.0
  %377 = vmatprep.mubr.f32.mxu0 %v308
  %378 = vmatmul.mubr.f32.gmra.mrb[0].mxu0 %v303
  %v379 = vpop.f32.mrb[0].mxu0
  %v380 = vadd.f32 0.0, %v379
  %v381 = vpop.f32.mrb[0].mxu0
  %382 = vmatprep.mubr.f32.mxu0 %v311
  %383 = vmatmul.mubr.f32.gmra.mrb[0].mxu0 %v305
  %v384 = vpop.f32.mrb[0].mxu0
  %v385 = vadd.f32 0.0, %v384
  %v386 = vpop.f32.mrb[0].mxu0
  %387 = vdwg.mxu0
  %v388 = vadd.f32 %v122, %v208
  %v389 = vadd.f32 %v127, %v213
  %v390 = vadd.f32 %v388, %v294
  %v391 = vadd.f32 %v389, %v299
  %v392 = vadd.f32 %v390, %v380
  %v393 = vadd.f32 %v391, %v385
  %vm394 = vcmask 261120
  %v395 = vsel %vm394, %v392, 0.0
  %396 = vadd.xlane.f32.xlu0 %v395
  %v397 = vpop.xlane.xlu0 %396
  %v398 = vsel %vm394, %v393, 0.0
  %399 = vadd.xlane.f32.xlu0 %v398
  %v400 = vpop.xlane.xlu0 %399
  %v401 = vrcp.pop 128.0
  %v402 = vmul.f32 %v397, %v401
  %v403 = vmul.f32 %v400, %v401
  %v404 = vsub.f32 %v122, %v402
  %v405 = vsub.f32 %v127, %v403
  %v406 = vsub.f32 %v208, %v402
  %v407 = vsub.f32 %v213, %v403
  %v408 = vsub.f32 %v294, %v402
  %v409 = vsub.f32 %v299, %v403
  %v410 = vsub.f32 %v380, %v402
  %v411 = vsub.f32 %v385, %v403
  %v412 = vmul.f32 %v404, %v404
  %v413 = vmul.f32 %v405, %v405
  %v414 = vsel %vm394, %v412, 0.0
  %415 = vadd.xlane.f32.xlu0 %v414
  %v416 = vpop.xlane.xlu0 %415
  %v417 = vsel %vm394, %v413, 0.0
  %418 = vadd.xlane.f32.xlu0 %v417
  %v419 = vpop.xlane.xlu0 %418
  %v420 = vmul.f32 %v406, %v406
  %v421 = vmul.f32 %v407, %v407
  %v422 = vsel %vm394, %v420, 0.0
  %423 = vadd.xlane.f32.xlu0 %v422
  %v424 = vpop.xlane.xlu0 %423
  %v425 = vsel %vm394, %v421, 0.0
  %426 = vadd.xlane.f32.xlu0 %v425
  %v427 = vpop.xlane.xlu0 %426
  %v428 = vadd.f32 %v416, %v424
  %v429 = vadd.f32 %v419, %v427
  %v430 = vmul.f32 %v408, %v408
  %v431 = vmul.f32 %v409, %v409
  %v432 = vsel %vm394, %v430, 0.0
  %433 = vadd.xlane.f32.xlu0 %v432
  %v434 = vpop.xlane.xlu0 %433
  %v435 = vsel %vm394, %v431, 0.0
  %436 = vadd.xlane.f32.xlu0 %v435
  %v437 = vpop.xlane.xlu0 %436
  %v438 = vadd.f32 %v428, %v434
  %v439 = vadd.f32 %v429, %v437
  %v440 = vmul.f32 %v410, %v410
  %v441 = vmul.f32 %v411, %v411
  %v442 = vsel %vm394, %v440, 0.0
  %443 = vadd.xlane.f32.xlu0 %v442
  %v444 = vpop.xlane.xlu0 %443
  %v445 = vsel %vm394, %v441, 0.0
  %446 = vadd.xlane.f32.xlu0 %v445
  %v447 = vpop.xlane.xlu0 %446
  %v448 = vadd.f32 %v438, %v444
  %v449 = vadd.f32 %v439, %v447
  %v450 = vmul.f32 %v448, %v401
  %v451 = vmul.f32 %v449, %v401
  %v452 = vld [vmem:[%s1] sm:$0xff]
  %v453 = vld [vmem:[%s1 + $0x8] sm:$0xff]
  %v454 = vadd.f32 %v450, 1e-05
  %v455 = vadd.f32 %v451, 1e-05
  %v456 = vrsqrt.pop %v454
  %v457 = vrsqrt.pop %v455
  %v458 = vmul.f32 %v452, %v456
  %v459 = vmul.f32 %v453, %v457
  %v460 = vld [vmem:[%s2] sm:$0xff]
  %v461 = vld [vmem:[%s2 + $0x8] sm:$0xff]
  %463 = vset.pattern.permute.xlu0 0
  %464 = vperm.xlu0 %463, %v458
  %v465 = vpop.permute.xlu0 %464
  %468 = vset.pattern.permute.xlu0 0
  %469 = vperm.xlu0 %468, %v459
  %v470 = vpop.permute.xlu0 %469
  %v472 = vmul.f32 %v404, %v465
  %v473 = vmul.f32 %v405, %v470
  %475 = vset.pattern.permute.xlu0 0
  %476 = vperm.xlu0 %475, %v460
  %v477 = vpop.permute.xlu0 %476
  %480 = vset.pattern.permute.xlu0 0
  %481 = vperm.xlu0 %480, %v461
  %v482 = vpop.permute.xlu0 %481
  %v484 = vadd.f32 %v472, %v477
  %v485 = vadd.f32 %v473, %v482
  %v486 = vmax.f32 %v484, 0.0
  %v487 = vmax.f32 %v485, 0.0
  %v488 = vmul.f32 %v406, %v465
  %v489 = vmul.f32 %v407, %v470
  %v490 = vadd.f32 %v488, %v477
  %v491 = vadd.f32 %v489, %v482
  %v492 = vmax.f32 %v490, 0.0
  %v493 = vmax.f32 %v491, 0.0
  %v494 = vmul.f32 %v408, %v465
  %v495 = vmul.f32 %v409, %v470
  %v496 = vadd.f32 %v494, %v477
  %v497 = vadd.f32 %v495, %v482
  %v498 = vmax.f32 %v496, 0.0
  %v499 = vmax.f32 %v497, 0.0
  %v500 = vmul.f32 %v410, %v465
  %v501 = vmul.f32 %v411, %v470
  %v502 = vadd.f32 %v500, %v477
  %v503 = vadd.f32 %v501, %v482
  %v504 = vmax.f32 %v502, 0.0
  %v505 = vmax.f32 %v503, 0.0
  %v506 = vmax.f32 %v486, %v492
  %v507 = vmax.f32 %v487, %v493
  %v508 = vmax.f32 %v498, %v504
  %v509 = vmax.f32 %v499, %v505
  %v510 = vmax.f32 %v506, %v508
  %v511 = vmax.f32 %v507, %v509
  %512 = vst.msk [vmem:[%s4] sm:$0xff] %vm394, %v510
  %513 = vst.msk [vmem:[%s4 + $0x8] sm:$0xff] %vm394, %v511
  // Predicated region
  $region18: #{_lambda_.3} parent=0 // pred_check
    _
  $region19: #{_lambda_.3} parent=0 // pred_check_branch
    %515 = sbr.rel (0) target = $region21
  $region20: #{_lambda_.3} parent=0 // pred_region
    _
  $region21: #{_lambda_.3} parent=0 // pred_fallthru
    _
  // Predicated region
  $region22: #{_lambda_.3} parent=0 // pred_check
    _
  $region23: #{_lambda_.3} parent=0 // pred_check_branch
    %517 = sbr.rel (0) target = $region25
  $region24: #{_lambda_.3} parent=0 // pred_region
    _
  $region25: #{_lambda_.3} parent=0 // pred_fallthru
    _

</llo_original>
